<compile_context>
chip_gen: v7x
topology: tpu7x:2x2x1
jax: 0.10.0
libtpu: 0.0.40
codegen_flags: <defaults>
</compile_context>

<pallas_src>
import math

import jax
import jax.numpy as jnp
from jax import lax
from jax.experimental import pallas as pl
from jax.experimental.pallas import tpu as pltpu

# ----------------------- config (T5Config equivalent) -----------------------
D_MODEL = 32
N_HEADS = 4
D_KV = 8
INNER = N_HEADS * D_KV
NUM_BUCKETS = 32
MAX_DISTANCE = 128
IS_DECODER = False
HAS_RELATIVE_ATTENTION_BIAS = True
# dropout: nn.functional.dropout with training=False is the identity (eval mode)


# ----------------------------- fused kernel body ----------------------------
def _softmax_lastdim(scores):
    """Stable softmax over the last axis.

    Reciprocal of the denominator goes to the EUP (approx) and is refined with
    one Newton step on the VPU -> effectively exact 1/sum while keeping the
    VALU pressure near zero.
    """
    m = jnp.max(scores, axis=-1, keepdims=True)
    e = jnp.exp(scores - m)
    s = jnp.sum(e, axis=-1, keepdims=True)
    r = pl.reciprocal(s, approx=True)
    r = r * (2.0 - s * r)          # one Newton-Raphson refinement
    return e * r


def _mha_heads(q_t, k_t, v_t, bias, wo_t):
    """Per-head attention with the output projection fused in.

    q_t:  (INNER, Sq)  transposed query projections (head-major rows)
    k_t:  (INNER, Sk)  transposed key projections
    v_t:  (INNER, Sk)  transposed value projections
    bias: (H, Sq, Sk)  position bias (already includes the mask)
    wo_t: (INNER, D_MODEL)
    returns (Sq, D_MODEL) float32
    """
    sq = q_t.shape[1]
    out = jnp.zeros((sq, wo_t.shape[1]), jnp.float32)
    for h in range(N_HEADS):                       # tiny static loop, fully unrolled
        lo, hi = h * D_KV, (h + 1) * D_KV          # sublane-aligned slices
        qh = q_t[lo:hi, :].T                       # (Sq, d_kv) single-vreg transpose
        # scores = qh @ kh^T : k_t rows already are kh^T, no transpose needed.
        scores = jnp.dot(qh, k_t[lo:hi, :], preferred_element_type=jnp.float32)
        scores = scores + bias[h]                  # T5: no 1/sqrt(d_kv) scaling
        p = _softmax_lastdim(scores)
        # ctx = p @ vh : contract Sk of p with Sk (last dim) of v_t rows (trans_b).
        ctx = lax.dot_general(p, v_t[lo:hi, :], (((1,), (1,)), ((), ())),
                              preferred_element_type=jnp.float32)      # (Sq, d_kv)
        # Fused output projection: accumulate this head's contribution.
        out = out + jnp.dot(ctx, wo_t[lo:hi, :], preferred_element_type=jnp.float32)
    return out


def _t5_self_attn_kernel(x_ref, wqkv_ref, wo_ref, bias_ref, o_ref):
    x = x_ref[...].astype(jnp.float32)             # (S, D_MODEL)
    wqkv = wqkv_ref[...].astype(jnp.float32)       # (3*INNER, D_MODEL) rows=[q;k;v]
    # Single fused QKV matmul: qkv_t[r, s] = sum_c wqkv[r, c] * x[s, c]
    qkv_t = lax.dot_general(wqkv, x, (((1,), (1,)), ((), ())),
                            preferred_element_type=jnp.float32)        # (3*INNER, S)
    q_t = qkv_t[:INNER, :]
    k_t = qkv_t[INNER:2 * INNER, :]
    v_t = qkv_t[2 * INNER:, :]
    out = _mha_heads(q_t, k_t, v_t,
                     bias_ref[...].astype(jnp.float32),
                     wo_ref[...].astype(jnp.float32))
    o_ref[...] = out.astype(o_ref.dtype)


def _t5_cross_attn_kernel(x_ref, kv_ref, wqkv_ref, wo_ref, bias_ref, o_ref):
    x = x_ref[...].astype(jnp.float32)             # (S, D_MODEL)
    kvs = kv_ref[...].astype(jnp.float32)          # (K, D_MODEL)
    wqkv = wqkv_ref[...].astype(jnp.float32)       # (3*INNER, D_MODEL)
    q_t = lax.dot_general(wqkv[:INNER, :], x, (((1,), (1,)), ((), ())),
                          preferred_element_type=jnp.float32)          # (INNER, S)
    kv_t = lax.dot_general(wqkv[INNER:, :], kvs, (((1,), (1,)), ((), ())),
                           preferred_element_type=jnp.float32)         # (2*INNER, K)
    out = _mha_heads(q_t, kv_t[:INNER, :], kv_t[INNER:, :],
                     bias_ref[...].astype(jnp.float32),
                     wo_ref[...].astype(jnp.float32))
    o_ref[...] = out.astype(o_ref.dtype)


# ------------------------------ pallas_call wrappers -------------------------
def _bias_index_map(bias_batch):
    if bias_batch == 1:
        return lambda b: (0, 0, 0, 0)      # shared bias: DMA'd once, resident
    return lambda b: (b, 0, 0, 0)          # batched (masked) bias: per-step block


def _fused_self_attention(x, wqkv, wo_t, bias):
    B, S, d_model = x.shape
    _, H, _, K = bias.shape
    return pl.pallas_call(
        _t5_self_attn_kernel,
        grid=(B,),
        in_specs=[
            pl.BlockSpec((None, S, d_model), lambda b: (b, 0, 0)),
            pl.BlockSpec(wqkv.shape, lambda b: (0, 0)),        # resident, DMA'd once
            pl.BlockSpec(wo_t.shape, lambda b: (0, 0)),        # resident, DMA'd once
            pl.BlockSpec((None, H, S, K), _bias_index_map(bias.shape[0])),
        ],
        out_specs=pl.BlockSpec((None, S, d_model), lambda b: (b, 0, 0)),
        out_shape=jax.ShapeDtypeStruct((B, S, d_model), x.dtype),
        compiler_params=pltpu.CompilerParams(dimension_semantics=("parallel",)),
    )(x, wqkv, wo_t, bias)


def _fused_cross_attention(x, kv, wqkv, wo_t, bias):
    B, S, d_model = x.shape
    K_len = kv.shape[1]
    _, H, _, K = bias.shape
    return pl.pallas_call(
        _t5_cross_attn_kernel,
        grid=(B,),
        in_specs=[
            pl.BlockSpec((None, S, d_model), lambda b: (b, 0, 0)),
            pl.BlockSpec((None, K_len, d_model), lambda b: (b, 0, 0)),
            pl.BlockSpec(wqkv.shape, lambda b: (0, 0)),
            pl.BlockSpec(wo_t.shape, lambda b: (0, 0)),
            pl.BlockSpec((None, H, S, K), _bias_index_map(bias.shape[0])),
        ],
        out_specs=pl.BlockSpec((None, S, d_model), lambda b: (b, 0, 0)),
        out_shape=jax.ShapeDtypeStruct((B, S, d_model), x.dtype),
        compiler_params=pltpu.CompilerParams(dimension_semantics=("parallel",)),
    )(x, kv, wqkv, wo_t, bias)


# --------------------- relative position bias (JAX glue) --------------------
# TODO(synk): the bucket/log/embedding gather is a data-dependent gather; it is
# computed once in plain JAX (it is also a returned value of the module and is
# reused across layers in T5) and passed to the kernel as a resident block.
def _relative_position_bucket(relative_position, bidirectional, num_buckets, max_distance):
    relative_buckets = jnp.zeros_like(relative_position)
    if bidirectional:
        num_buckets //= 2
        relative_buckets = relative_buckets + (relative_position > 0).astype(jnp.int32) * num_buckets
        relative_position = jnp.abs(relative_position)
    else:
        relative_position = -jnp.minimum(relative_position, jnp.zeros_like(relative_position))
    max_exact = num_buckets // 2
    is_small = relative_position < max_exact
    rp_f = relative_position.astype(jnp.float32)
    rp_if_large = max_exact + (
        jnp.log(rp_f / max_exact) / math.log(max_distance / max_exact) * (num_buckets - max_exact)
    ).astype(jnp.int32)
    rp_if_large = jnp.minimum(rp_if_large, num_buckets - 1)
    relative_buckets = relative_buckets + jnp.where(is_small, relative_position, rp_if_large)
    return relative_buckets


def compute_bias(rel_emb, query_length, key_length, dtype=jnp.float32):
    """rel_emb: (num_buckets, n_heads) -> (1, n_heads, q_len, k_len)"""
    ctx = jnp.arange(query_length, dtype=jnp.int32)[:, None]
    mem = jnp.arange(key_length, dtype=jnp.int32)[None, :]
    relative_position = mem - ctx
    bucket = _relative_position_bucket(
        relative_position,
        bidirectional=not IS_DECODER,
        num_buckets=NUM_BUCKETS,
        max_distance=MAX_DISTANCE,
    )
    values = rel_emb[bucket]                         # (q, k, H) embedding gather
    values = jnp.transpose(values, (2, 0, 1))[None]  # (1, H, q, k)
    return values.astype(dtype)


# --------------------------------- forward ----------------------------------
def t5_attention_forward(params, hidden_states, mask=None, key_value_states=None,
                         position_bias=None):
    B, S, _ = hidden_states.shape
    K_len = S if key_value_states is None else key_value_states.shape[1]

    if position_bias is None:
        if HAS_RELATIVE_ATTENTION_BIAS:
            position_bias = compute_bias(params["rel_emb"], S, K_len, hidden_states.dtype)
        else:
            position_bias = jnp.zeros((1, N_HEADS, S, K_len), hidden_states.dtype)
        if mask is not None:
            position_bias = position_bias + mask     # exactly what the torch module does

    if key_value_states is None:
        out = _fused_self_attention(hidden_states, params["wqkv"], params["wo_t"], position_bias)
    else:
        out = _fused_cross_attention(hidden_states, key_value_states,
                                     params["wqkv"], params["wo_t"], position_bias)
    return out, position_bias


# ------------------------------ pure-JAX reference ---------------------------
def _reference(params, hidden_states, position_bias, key_value_states=None):
    B, S, _ = hidden_states.shape
    kv_in = hidden_states if key_value_states is None else key_value_states
    K_len = kv_in.shape[1]
    wqkv = params["wqkv"]
    q = hidden_states @ wqkv[:INNER].T
    k = kv_in @ wqkv[INNER:2 * INNER].T
    v = kv_in @ wqkv[2 * INNER:].T
    q = q.reshape(B, S, N_HEADS, D_KV).transpose(0, 2, 1, 3)
    k = k.reshape(B, K_len, N_HEADS, D_KV).transpose(0, 2, 1, 3)
    v = v.reshape(B, K_len, N_HEADS, D_KV).transpose(0, 2, 1, 3)
    scores = jnp.einsum("bhqd,bhkd->bhqk", q, k) + position_bias
    w = jax.nn.softmax(scores.astype(jnp.float32), axis=-1).astype(scores.dtype)
    o = jnp.einsum("bhqk,bhkd->bhqd", w, v)
    o = o.transpose(0, 2, 1, 3).reshape(B, S, INNER)
    return o @ params["wo_t"]


# ----------------------------------- main ------------------------------------
if __name__ == "__main__":
    B, S, K_LEN = 2, 8, 16
    key = jax.random.PRNGKey(0)
    k1, k2, k3, k4, k5, k6, k7 = jax.random.split(key, 7)

    # nn.Linear weights in PyTorch (out, in) layout.
    wq = jax.random.normal(k1, (INNER, D_MODEL), jnp.float32) * 0.05
    wk = jax.random.normal(k2, (INNER, D_MODEL), jnp.float32) * 0.05
    wv = jax.random.normal(k3, (INNER, D_MODEL), jnp.float32) * 0.05
    wo = jax.random.normal(k4, (D_MODEL, INNER), jnp.float32) * 0.05

    params = {
        "wqkv": jnp.concatenate([wq, wk, wv], axis=0),   # (3*INNER, D_MODEL), rows=[q;k;v]
        "wo_t": wo.T,                                    # (INNER, D_MODEL)
        "rel_emb": jax.random.normal(k5, (NUM_BUCKETS, N_HEADS), jnp.float32) * 0.05,
    }
    hidden_states = jax.random.normal(k6, (B, S, D_MODEL), jnp.float32)

    # ------------------------- self-attention path -------------------------
    out, pos_bias = t5_attention_forward(params, hidden_states)
    out = jax.block_until_ready(out)
    pos_bias = jax.block_until_ready(pos_bias)

    assert out.shape == (B, S, D_MODEL)
    assert pos_bias.shape == (1, N_HEADS, S, S)
    ref_bias = compute_bias(params["rel_emb"], S, S, hidden_states.dtype)
    assert jnp.allclose(pos_bias, ref_bias, atol=1e-6, rtol=1e-6)
    ref_out = _reference(params, hidden_states, pos_bias)
    err = float(jnp.max(jnp.abs(out - ref_out)))
    assert jnp.allclose(out, ref_out, atol=2e-3, rtol=2e-3), f"self-attn max abs err {err}"

    # --------------- cross-attention path (with additive mask) ---------------
    kv_states = jax.random.normal(k7, (B, K_LEN, D_MODEL), jnp.float32)
    # batch 0: all key positions valid, batch 1: last 3 key positions masked out
    valid = jnp.ones((B, K_LEN), jnp.float32).at[1, -3:].set(0.0)
    mask = jnp.where(valid > 0, 0.0, -1e9)[:, None, None, :]          # (B,1,1,K)

    out_x, bias_x = t5_attention_forward(params, hidden_states, mask=mask,
                                         key_value_states=kv_states)
    out_x = jax.block_until_ready(out_x)
    bias_x = jax.block_until_ready(bias_x)

    assert out_x.shape == (B, S, D_MODEL)
    assert bias_x.shape == (B, N_HEADS, S, K_LEN)
    ref_out_x = _reference(params, hidden_states, bias_x, key_value_states=kv_states)
    err_x = float(jnp.max(jnp.abs(out_x - ref_out_x)))
    assert jnp.allclose(out_x, ref_out_x, atol=2e-3, rtol=2e-3), f"cross-attn max abs err {err_x}"

    print("KERNEL_OK")
</pallas_src>

<mosaic_0001>
module attributes {stable_mosaic.version = 11 : i64} {
  func.func @_t5_self_attn_kernel(%arg0: i32, %arg1: memref<1x8x32xf32, #tpu.memory_space<vmem>>, %arg2: memref<96x32xf32, #tpu.memory_space<vmem>>, %arg3: memref<32x32xf32, #tpu.memory_space<vmem>>, %arg4: memref<1x4x8x8xf32, #tpu.memory_space<vmem>>, %arg5: memref<1x8x32xf32, #tpu.memory_space<vmem>>) attributes {dimension_semantics = [#tpu.dimension_semantics<parallel>], iteration_bounds = array<i64: 2>, scalar_prefetch = 0 : i64, scratch_operands = 0 : i64, tpu.core_type = #tpu.core_type<tc>, window_params = [{transform_indices = @transform_0, window_bounds = array<i64: 1, 8, 32>}, {pipeline_mode = #tpu.pipeline_mode<synchronous>, transform_indices = @transform_1, window_bounds = array<i64: 96, 32>}, {pipeline_mode = #tpu.pipeline_mode<synchronous>, transform_indices = @transform_2, window_bounds = array<i64: 32, 32>}, {pipeline_mode = #tpu.pipeline_mode<synchronous>, transform_indices = @transform_3, window_bounds = array<i64: 1, 4, 8, 8>}, {transform_indices = @transform_4, window_bounds = array<i64: 1, 8, 32>}]} {
    %c0 = arith.constant 0 : index
    %c0_0 = arith.constant 0 : index
    %c0_1 = arith.constant 0 : index
    %0 = vector.load %arg1[%c0, %c0_0, %c0_1] : memref<1x8x32xf32, #tpu.memory_space<vmem>>, vector<1x8x32xf32>
    %1 = vector.shape_cast %0 : vector<1x8x32xf32> to vector<8x32xf32>
    %c0_2 = arith.constant 0 : index
    %c0_3 = arith.constant 0 : index
    %2 = vector.load %arg2[%c0_2, %c0_3] : memref<96x32xf32, #tpu.memory_space<vmem>>, vector<96x32xf32>
    %cst = arith.constant dense<0.000000e+00> : vector<96x8xf32>
    %3 = tpu.matmul %2, %1, %cst {dimension_numbers = #tpu.dot_dimension_numbers<[1], [1], [0], [0], [0, 0, 1, 0], [], []>} : vector<96x32xf32>, vector<8x32xf32>, vector<96x8xf32> -> vector<96x8xf32>
    %4 = vector.extract_strided_slice %3 {offsets = [0, 0], sizes = [32, 8], strides = [1, 1]} : vector<96x8xf32> to vector<32x8xf32>
    %5 = vector.extract_strided_slice %3 {offsets = [32, 0], sizes = [32, 8], strides = [1, 1]} : vector<96x8xf32> to vector<32x8xf32>
    %6 = vector.extract_strided_slice %3 {offsets = [64, 0], sizes = [32, 8], strides = [1, 1]} : vector<96x8xf32> to vector<32x8xf32>
    %c0_4 = arith.constant 0 : index
    %c0_5 = arith.constant 0 : index
    %c0_6 = arith.constant 0 : index
    %c0_7 = arith.constant 0 : index
    %7 = vector.load %arg4[%c0_4, %c0_5, %c0_6, %c0_7] : memref<1x4x8x8xf32, #tpu.memory_space<vmem>>, vector<1x4x8x8xf32>
    %8 = vector.shape_cast %7 : vector<1x4x8x8xf32> to vector<4x8x8xf32>
    %c0_8 = arith.constant 0 : index
    %c0_9 = arith.constant 0 : index
    %9 = vector.load %arg3[%c0_8, %c0_9] : memref<32x32xf32, #tpu.memory_space<vmem>>, vector<32x32xf32>
    %cst_10 = arith.constant 0.000000e+00 : f32
    %10 = vector.broadcast %cst_10 : f32 to vector<8x32xf32>
    %11 = vector.extract_strided_slice %4 {offsets = [0, 0], sizes = [8, 8], strides = [1, 1]} : vector<32x8xf32> to vector<8x8xf32>
    %12 = tpu.transpose %11, [1, 0] : vector<8x8xf32> -> vector<8x8xf32>
    %13 = vector.extract_strided_slice %5 {offsets = [0, 0], sizes = [8, 8], strides = [1, 1]} : vector<32x8xf32> to vector<8x8xf32>
    %cst_11 = arith.constant dense<0.000000e+00> : vector<8x8xf32>
    %14 = tpu.matmul %12, %13, %cst_11 {dimension_numbers = #tpu.dot_dimension_numbers<[1], [0], [0], [1], [0, 0, 1, 1], [], []>} : vector<8x8xf32>, vector<8x8xf32>, vector<8x8xf32> -> vector<8x8xf32>
    %15 = vector.extract_strided_slice %8 {offsets = [0, 0, 0], sizes = [1, 8, 8], strides = [1, 1, 1]} : vector<4x8x8xf32> to vector<1x8x8xf32>
    %16 = vector.shape_cast %15 : vector<1x8x8xf32> to vector<8x8xf32>
    %17 = arith.addf %14, %16 : vector<8x8xf32>
    %cst_12 = arith.constant dense<0xFF800000> : vector<8xf32>
    %18 = vector.multi_reduction <maximumf>, %17, %cst_12 [1] : vector<8x8xf32> to vector<8xf32>
    %19 = vector.shape_cast %18 : vector<8xf32> to vector<8x1xf32>
    %20 = vector.broadcast %19 : vector<8x1xf32> to vector<8x8xf32>
    %21 = arith.subf %17, %20 : vector<8x8xf32>
    %22 = math.exp %21 : vector<8x8xf32>
    %cst_13 = arith.constant dense<0.000000e+00> : vector<8xf32>
    %23 = vector.multi_reduction <add>, %22, %cst_13 [1] : vector<8x8xf32> to vector<8xf32>
    %24 = vector.shape_cast %23 : vector<8xf32> to vector<8x1xf32>
    %25 = tpu.reciprocal %24 {approx = true} : vector<8x1xf32> -> vector<8x1xf32>
    %26 = arith.mulf %24, %25 : vector<8x1xf32>
    %cst_14 = arith.constant 2.000000e+00 : f32
    %27 = vector.broadcast %cst_14 : f32 to vector<8x1xf32>
    %28 = arith.subf %27, %26 : vector<8x1xf32>
    %29 = arith.mulf %25, %28 : vector<8x1xf32>
    %30 = vector.broadcast %29 : vector<8x1xf32> to vector<8x8xf32>
    %31 = arith.mulf %22, %30 : vector<8x8xf32>
    %32 = vector.extract_strided_slice %6 {offsets = [0, 0], sizes = [8, 8], strides = [1, 1]} : vector<32x8xf32> to vector<8x8xf32>
    %cst_15 = arith.constant dense<0.000000e+00> : vector<8x8xf32>
    %33 = tpu.matmul %31, %32, %cst_15 {dimension_numbers = #tpu.dot_dimension_numbers<[1], [1], [0], [0], [0, 0, 1, 0], [], []>} : vector<8x8xf32>, vector<8x8xf32>, vector<8x8xf32> -> vector<8x8xf32>
    %34 = vector.extract_strided_slice %9 {offsets = [0, 0], sizes = [8, 32], strides = [1, 1]} : vector<32x32xf32> to vector<8x32xf32>
    %cst_16 = arith.constant dense<0.000000e+00> : vector<8x32xf32>
    %35 = tpu.matmul %33, %34, %cst_16 {dimension_numbers = #tpu.dot_dimension_numbers<[1], [0], [0], [1], [0, 0, 1, 1], [], []>} : vector<8x8xf32>, vector<8x32xf32>, vector<8x32xf32> -> vector<8x32xf32>
    %36 = arith.addf %10, %35 : vector<8x32xf32>
    %37 = vector.extract_strided_slice %4 {offsets = [8, 0], sizes = [8, 8], strides = [1, 1]} : vector<32x8xf32> to vector<8x8xf32>
    %38 = tpu.transpose %37, [1, 0] : vector<8x8xf32> -> vector<8x8xf32>
    %39 = vector.extract_strided_slice %5 {offsets = [8, 0], sizes = [8, 8], strides = [1, 1]} : vector<32x8xf32> to vector<8x8xf32>
    %cst_17 = arith.constant dense<0.000000e+00> : vector<8x8xf32>
    %40 = tpu.matmul %38, %39, %cst_17 {dimension_numbers = #tpu.dot_dimension_numbers<[1], [0], [0], [1], [0, 0, 1, 1], [], []>} : vector<8x8xf32>, vector<8x8xf32>, vector<8x8xf32> -> vector<8x8xf32>
    %41 = vector.extract_strided_slice %8 {offsets = [1, 0, 0], sizes = [1, 8, 8], strides = [1, 1, 1]} : vector<4x8x8xf32> to vector<1x8x8xf32>
    %42 = vector.shape_cast %41 : vector<1x8x8xf32> to vector<8x8xf32>
    %43 = arith.addf %40, %42 : vector<8x8xf32>
    %cst_18 = arith.constant dense<0xFF800000> : vector<8xf32>
    %44 = vector.multi_reduction <maximumf>, %43, %cst_18 [1] : vector<8x8xf32> to vector<8xf32>
    %45 = vector.shape_cast %44 : vector<8xf32> to vector<8x1xf32>
    %46 = vector.broadcast %45 : vector<8x1xf32> to vector<8x8xf32>
    %47 = arith.subf %43, %46 : vector<8x8xf32>
    %48 = math.exp %47 : vector<8x8xf32>
    %cst_19 = arith.constant dense<0.000000e+00> : vector<8xf32>
    %49 = vector.multi_reduction <add>, %48, %cst_19 [1] : vector<8x8xf32> to vector<8xf32>
    %50 = vector.shape_cast %49 : vector<8xf32> to vector<8x1xf32>
    %51 = tpu.reciprocal %50 {approx = true} : vector<8x1xf32> -> vector<8x1xf32>
    %52 = arith.mulf %50, %51 : vector<8x1xf32>
    %cst_20 = arith.constant 2.000000e+00 : f32
    %53 = vector.broadcast %cst_20 : f32 to vector<8x1xf32>
    %54 = arith.subf %53, %52 : vector<8x1xf32>
    %55 = arith.mulf %51, %54 : vector<8x1xf32>
    %56 = vector.broadcast %55 : vector<8x1xf32> to vector<8x8xf32>
    %57 = arith.mulf %48, %56 : vector<8x8xf32>
    %58 = vector.extract_strided_slice %6 {offsets = [8, 0], sizes = [8, 8], strides = [1, 1]} : vector<32x8xf32> to vector<8x8xf32>
    %cst_21 = arith.constant dense<0.000000e+00> : vector<8x8xf32>
    %59 = tpu.matmul %57, %58, %cst_21 {dimension_numbers = #tpu.dot_dimension_numbers<[1], [1], [0], [0], [0, 0, 1, 0], [], []>} : vector<8x8xf32>, vector<8x8xf32>, vector<8x8xf32> -> vector<8x8xf32>
    %60 = vector.extract_strided_slice %9 {offsets = [8, 0], sizes = [8, 32], strides = [1, 1]} : vector<32x32xf32> to vector<8x32xf32>
    %cst_22 = arith.constant dense<0.000000e+00> : vector<8x32xf32>
    %61 = tpu.matmul %59, %60, %cst_22 {dimension_numbers = #tpu.dot_dimension_numbers<[1], [0], [0], [1], [0, 0, 1, 1], [], []>} : vector<8x8xf32>, vector<8x32xf32>, vector<8x32xf32> -> vector<8x32xf32>
    %62 = arith.addf %36, %61 : vector<8x32xf32>
    %63 = vector.extract_strided_slice %4 {offsets = [16, 0], sizes = [8, 8], strides = [1, 1]} : vector<32x8xf32> to vector<8x8xf32>
    %64 = tpu.transpose %63, [1, 0] : vector<8x8xf32> -> vector<8x8xf32>
    %65 = vector.extract_strided_slice %5 {offsets = [16, 0], sizes = [8, 8], strides = [1, 1]} : vector<32x8xf32> to vector<8x8xf32>
    %cst_23 = arith.constant dense<0.000000e+00> : vector<8x8xf32>
    %66 = tpu.matmul %64, %65, %cst_23 {dimension_numbers = #tpu.dot_dimension_numbers<[1], [0], [0], [1], [0, 0, 1, 1], [], []>} : vector<8x8xf32>, vector<8x8xf32>, vector<8x8xf32> -> vector<8x8xf32>
    %67 = vector.extract_strided_slice %8 {offsets = [2, 0, 0], sizes = [1, 8, 8], strides = [1, 1, 1]} : vector<4x8x8xf32> to vector<1x8x8xf32>
    %68 = vector.shape_cast %67 : vector<1x8x8xf32> to vector<8x8xf32>
    %69 = arith.addf %66, %68 : vector<8x8xf32>
    %cst_24 = arith.constant dense<0xFF800000> : vector<8xf32>
    %70 = vector.multi_reduction <maximumf>, %69, %cst_24 [1] : vector<8x8xf32> to vector<8xf32>
    %71 = vector.shape_cast %70 : vector<8xf32> to vector<8x1xf32>
    %72 = vector.broadcast %71 : vector<8x1xf32> to vector<8x8xf32>
    %73 = arith.subf %69, %72 : vector<8x8xf32>
    %74 = math.exp %73 : vector<8x8xf32>
    %cst_25 = arith.constant dense<0.000000e+00> : vector<8xf32>
    %75 = vector.multi_reduction <add>, %74, %cst_25 [1] : vector<8x8xf32> to vector<8xf32>
    %76 = vector.shape_cast %75 : vector<8xf32> to vector<8x1xf32>
    %77 = tpu.reciprocal %76 {approx = true} : vector<8x1xf32> -> vector<8x1xf32>
    %78 = arith.mulf %76, %77 : vector<8x1xf32>
    %cst_26 = arith.constant 2.000000e+00 : f32
    %79 = vector.broadcast %cst_26 : f32 to vector<8x1xf32>
    %80 = arith.subf %79, %78 : vector<8x1xf32>
    %81 = arith.mulf %77, %80 : vector<8x1xf32>
    %82 = vector.broadcast %81 : vector<8x1xf32> to vector<8x8xf32>
    %83 = arith.mulf %74, %82 : vector<8x8xf32>
    %84 = vector.extract_strided_slice %6 {offsets = [16, 0], sizes = [8, 8], strides = [1, 1]} : vector<32x8xf32> to vector<8x8xf32>
    %cst_27 = arith.constant dense<0.000000e+00> : vector<8x8xf32>
    %85 = tpu.matmul %83, %84, %cst_27 {dimension_numbers = #tpu.dot_dimension_numbers<[1], [1], [0], [0], [0, 0, 1, 0], [], []>} : vector<8x8xf32>, vector<8x8xf32>, vector<8x8xf32> -> vector<8x8xf32>
    %86 = vector.extract_strided_slice %9 {offsets = [16, 0], sizes = [8, 32], strides = [1, 1]} : vector<32x32xf32> to vector<8x32xf32>
    %cst_28 = arith.constant dense<0.000000e+00> : vector<8x32xf32>
    %87 = tpu.matmul %85, %86, %cst_28 {dimension_numbers = #tpu.dot_dimension_numbers<[1], [0], [0], [1], [0, 0, 1, 1], [], []>} : vector<8x8xf32>, vector<8x32xf32>, vector<8x32xf32> -> vector<8x32xf32>
    %88 = arith.addf %62, %87 : vector<8x32xf32>
    %89 = vector.extract_strided_slice %4 {offsets = [24, 0], sizes = [8, 8], strides = [1, 1]} : vector<32x8xf32> to vector<8x8xf32>
    %90 = tpu.transpose %89, [1, 0] : vector<8x8xf32> -> vector<8x8xf32>
    %91 = vector.extract_strided_slice %5 {offsets = [24, 0], sizes = [8, 8], strides = [1, 1]} : vector<32x8xf32> to vector<8x8xf32>
    %cst_29 = arith.constant dense<0.000000e+00> : vector<8x8xf32>
    %92 = tpu.matmul %90, %91, %cst_29 {dimension_numbers = #tpu.dot_dimension_numbers<[1], [0], [0], [1], [0, 0, 1, 1], [], []>} : vector<8x8xf32>, vector<8x8xf32>, vector<8x8xf32> -> vector<8x8xf32>
    %93 = vector.extract_strided_slice %8 {offsets = [3, 0, 0], sizes = [1, 8, 8], strides = [1, 1, 1]} : vector<4x8x8xf32> to vector<1x8x8xf32>
    %94 = vector.shape_cast %93 : vector<1x8x8xf32> to vector<8x8xf32>
    %95 = arith.addf %92, %94 : vector<8x8xf32>
    %cst_30 = arith.constant dense<0xFF800000> : vector<8xf32>
    %96 = vector.multi_reduction <maximumf>, %95, %cst_30 [1] : vector<8x8xf32> to vector<8xf32>
    %97 = vector.shape_cast %96 : vector<8xf32> to vector<8x1xf32>
    %98 = vector.broadcast %97 : vector<8x1xf32> to vector<8x8xf32>
    %99 = arith.subf %95, %98 : vector<8x8xf32>
    %100 = math.exp %99 : vector<8x8xf32>
    %cst_31 = arith.constant dense<0.000000e+00> : vector<8xf32>
    %101 = vector.multi_reduction <add>, %100, %cst_31 [1] : vector<8x8xf32> to vector<8xf32>
    %102 = vector.shape_cast %101 : vector<8xf32> to vector<8x1xf32>
    %103 = tpu.reciprocal %102 {approx = true} : vector<8x1xf32> -> vector<8x1xf32>
    %104 = arith.mulf %102, %103 : vector<8x1xf32>
    %cst_32 = arith.constant 2.000000e+00 : f32
    %105 = vector.broadcast %cst_32 : f32 to vector<8x1xf32>
    %106 = arith.subf %105, %104 : vector<8x1xf32>
    %107 = arith.mulf %103, %106 : vector<8x1xf32>
    %108 = vector.broadcast %107 : vector<8x1xf32> to vector<8x8xf32>
    %109 = arith.mulf %100, %108 : vector<8x8xf32>
    %110 = vector.extract_strided_slice %6 {offsets = [24, 0], sizes = [8, 8], strides = [1, 1]} : vector<32x8xf32> to vector<8x8xf32>
    %cst_33 = arith.constant dense<0.000000e+00> : vector<8x8xf32>
    %111 = tpu.matmul %109, %110, %cst_33 {dimension_numbers = #tpu.dot_dimension_numbers<[1], [1], [0], [0], [0, 0, 1, 0], [], []>} : vector<8x8xf32>, vector<8x8xf32>, vector<8x8xf32> -> vector<8x8xf32>
    %112 = vector.extract_strided_slice %9 {offsets = [24, 0], sizes = [8, 32], strides = [1, 1]} : vector<32x32xf32> to vector<8x32xf32>
    %cst_34 = arith.constant dense<0.000000e+00> : vector<8x32xf32>
    %113 = tpu.matmul %111, %112, %cst_34 {dimension_numbers = #tpu.dot_dimension_numbers<[1], [0], [0], [1], [0, 0, 1, 1], [], []>} : vector<8x8xf32>, vector<8x32xf32>, vector<8x32xf32> -> vector<8x32xf32>
    %114 = arith.addf %88, %113 : vector<8x32xf32>
    %c0_35 = arith.constant 0 : index
    %c0_36 = arith.constant 0 : index
    %c0_37 = arith.constant 0 : index
    %115 = vector.load %arg5[%c0_35, %c0_36, %c0_37] : memref<1x8x32xf32, #tpu.memory_space<vmem>>, vector<1x8x32xf32>
    %116 = vector.shape_cast %115 : vector<1x8x32xf32> to vector<8x32xf32>
    %117 = vector.shape_cast %114 : vector<8x32xf32> to vector<1x8x32xf32>
    tpu.vector_store %arg5[%c0_35, %c0_36, %c0_37], %117 {strides = array<i32>} : memref<1x8x32xf32, #tpu.memory_space<vmem>>, vector<1x8x32xf32>,
    return
  }
  func.func @transform_0(%arg0: i32) -> (i32, i32, i32) {
    %c0_i32 = arith.constant 0 : i32
    %c0_i32_0 = arith.constant 0 : i32
    %c0_i32_1 = arith.constant 0 : i32
    return %arg0, %c0_i32, %c0_i32_0 : i32, i32, i32
  }
  func.func @transform_1(%arg0: i32) -> (i32, i32) {
    %c0_i32 = arith.constant 0 : i32
    %c0_i32_0 = arith.constant 0 : i32
    %c0_i32_1 = arith.constant 0 : i32
    return %c0_i32, %c0_i32_0 : i32, i32
  }
  func.func @transform_2(%arg0: i32) -> (i32, i32) {
    %c0_i32 = arith.constant 0 : i32
    %c0_i32_0 = arith.constant 0 : i32
    %c0_i32_1 = arith.constant 0 : i32
    return %c0_i32, %c0_i32_0 : i32, i32
  }
  func.func @transform_3(%arg0: i32) -> (i32, i32, i32, i32) {
    %c0_i32 = arith.constant 0 : i32
    %c0_i32_0 = arith.constant 0 : i32
    %c0_i32_1 = arith.constant 0 : i32
    %c0_i32_2 = arith.constant 0 : i32
    %c0_i32_3 = arith.constant 0 : i32
    return %c0_i32, %c0_i32_0, %c0_i32_1, %c0_i32_2 : i32, i32, i32, i32
  }
  func.func @transform_4(%arg0: i32) -> (i32, i32, i32) {
    %c0_i32 = arith.constant 0 : i32
    %c0_i32_0 = arith.constant 0 : i32
    %c0_i32_1 = arith.constant 0 : i32
    return %arg0, %c0_i32, %c0_i32_0 : i32, i32, i32
  }
}

</mosaic_0001>

<llo_original>
// kernel: tpu_custom_call.1
$region0: #{tpu_custom_call.1}
  #allocation0 [shape = 'u32[]', space=smem, size = 0x4, offset = 0x4, fixed_abs, tag = 'smem constant byte address 0x4 - core index']
  #allocation1 [shape = 'u32[144,128]{1,0:T(1,128)}', space=vmem, size = 0x12000, scoped, tag = 'internal scratch']
  %s0 = inlined_call_operand.vmem [shape: f32[2,8,32], index: 0, kind: input, shape index: {}]
  %s1 = inlined_call_operand.vmem [shape: f32[96,32], index: 1, kind: input, shape index: {}]
  %s2 = inlined_call_operand.vmem [shape: f32[32,32], index: 2, kind: input, shape index: {}]
  %s3 = inlined_call_operand.vmem [shape: f32[1,4,8,8], index: 3, kind: input, shape index: {}]
  %s4 = inlined_call_operand.hbm [shape: f32[2,8,32], index: 4, kind: output, shape index: {}]
  %s5 = sld [smem:[#allocation0]]
  $region49: #{tpu_custom_call.1} parent=0
    _
  %s7 = ssub.s32 1, %s5
  %s8 = scalar_select 0, %s7, %s5
  $region1: #{tpu_custom_call.1} parent=0
    #allocation2 [shape = 'u8[8192]{0}', space=vmem, size = 0x2000, scoped, tag = 'output window, operand 0']
    #allocation3 [shape = 's32[2]{0}', space=sflag, size = 0x8, scoped, tag = 'scoped memory for tpu_custom_call.1']
    %9 = vsyncpa [#allocation3], 0
    %s10 = scalar_lea.sflag [#allocation3], 1
    %11 = vsyncpa %s10, 0
    loop: start=0, step=1, limit=4
    $region2: #{tpu_custom_call.1} parent=1 // loop_pre_header
      _
    $region3: #{tpu_custom_call.1} parent=1 // loop_header
      %s13 = sphi 0, %s17
      %p14 = scmp.ge.s32.totalorder %s13, 4
      %s23 = sphi 0, %s25
      %s26 = sphi 0, %s23
      %s27 = sphi 0, %s26
      %s43 = sphi 0, %s27
      %s47 = sphi 0, %s47
      %s49 = sphi 0, %s47
      %s50 = sphi 0, %s49
      %s64 = sphi 0, %s50
      %s68 = sphi 0, %s68
      %s70 = sphi 0, %s68
      %s71 = sphi 0, %s70
      %s85 = sphi 0, %s71
      %s89 = sphi 0, %s89
      %s91 = sphi 0, %s89
      %s92 = sphi 0, %s91
      %s106 = sphi 0, %s92
      %s112 = sphi 0, %s114
      %s115 = sphi 0, %s112
      %s116 = sphi 0, %s115
      %s132 = sphi 0, %s116
    $region4: #{tpu_custom_call.1} parent=1 // loop_header_branch
      %16 = sbr.rel (%p14) target = $region8
    $region5: #{tpu_custom_call.1} parent=1 // loop_body
      %s18 = ssub.s32 %s13, 1
      %s19 = ssub.s32 %s13, 2
      %s20 = sadd.s32 %s13, 1
      %s21 = ssub.s32 %s13, %s20
      %p22 = scmp.eq.s32.totalorder %s21, 0
      %s24 = sadd.s32 %s23, 1
      %s25 = scalar_select %p22, %s23, %s24
      %p28 = pneg %p22
      %p29 = scmp.eq.s32.totalorder %s13, 1
      %p30 = por %p28, %p29
      %p31 = scmp.ne.s32.totalorder %s23, %s26
      %p32 = scmp.eq.s32.totalorder %s13, 0
      %p33 = por %p31, %p32
      %p34 = scmp.ne.s32.totalorder %s23, %s26
      %p35 = scmp.eq.s32.totalorder %s18, 1
      %p36 = por %p34, %p35
      %p37 = scmp.ne.s32.totalorder %s26, %s27
      %p38 = scmp.eq.s32.totalorder %s18, 0
      %p39 = por %p37, %p38
      %p40 = scmp.ne.s32.totalorder %s26, %s27
      %p41 = scmp.eq.s32.totalorder %s19, 1
      %p42 = por %p40, %p41
      %p44 = scmp.ne.s32.totalorder %s27, %s43
      %p45 = scmp.eq.s32.totalorder %s19, 0
      %p46 = por %p44, %p45
      %s48 = sadd.s32 %s47, 1
      %p51 = scmp.eq.s32.totalorder %s13, 1
      %p52 = scmp.ne.s32.totalorder %s47, %s49
      %p53 = scmp.eq.s32.totalorder %s13, 0
      %p54 = por %p52, %p53
      %p55 = scmp.ne.s32.totalorder %s47, %s49
      %p56 = scmp.eq.s32.totalorder %s18, 1
      %p57 = por %p55, %p56
      %p58 = scmp.ne.s32.totalorder %s49, %s50
      %p59 = scmp.eq.s32.totalorder %s18, 0
      %p60 = por %p58, %p59
      %p61 = scmp.ne.s32.totalorder %s49, %s50
      %p62 = scmp.eq.s32.totalorder %s19, 1
      %p63 = por %p61, %p62
      %p65 = scmp.ne.s32.totalorder %s50, %s64
      %p66 = scmp.eq.s32.totalorder %s19, 0
      %p67 = por %p65, %p66
      %s69 = sadd.s32 %s68, 1
      %p72 = scmp.eq.s32.totalorder %s13, 1
      %p73 = scmp.ne.s32.totalorder %s68, %s70
      %p74 = scmp.eq.s32.totalorder %s13, 0
      %p75 = por %p73, %p74
      %p76 = scmp.ne.s32.totalorder %s68, %s70
      %p77 = scmp.eq.s32.totalorder %s18, 1
      %p78 = por %p76, %p77
      %p79 = scmp.ne.s32.totalorder %s70, %s71
      %p80 = scmp.eq.s32.totalorder %s18, 0
      %p81 = por %p79, %p80
      %p82 = scmp.ne.s32.totalorder %s70, %s71
      %p83 = scmp.eq.s32.totalorder %s19, 1
      %p84 = por %p82, %p83
      %p86 = scmp.ne.s32.totalorder %s71, %s85
      %p87 = scmp.eq.s32.totalorder %s19, 0
      %p88 = por %p86, %p87
      %s90 = sadd.s32 %s89, 1
      %p93 = scmp.eq.s32.totalorder %s13, 1
      %p94 = scmp.ne.s32.totalorder %s89, %s91
      %p95 = scmp.eq.s32.totalorder %s13, 0
      %p96 = por %p94, %p95
      %p97 = scmp.ne.s32.totalorder %s89, %s91
      %p98 = scmp.eq.s32.totalorder %s18, 1
      %p99 = por %p97, %p98
      %p100 = scmp.ne.s32.totalorder %s91, %s92
      %p101 = scmp.eq.s32.totalorder %s18, 0
      %p102 = por %p100, %p101
      %p103 = scmp.ne.s32.totalorder %s91, %s92
      %p104 = scmp.eq.s32.totalorder %s19, 1
      %p105 = por %p103, %p104
      %p107 = scmp.ne.s32.totalorder %s92, %s106
      %p108 = scmp.eq.s32.totalorder %s19, 0
      %p109 = por %p107, %p108
      %s110 = ssub.s32 %s13, %s20
      %p111 = scmp.eq.s32.totalorder %s110, 0
      %s113 = sadd.s32 %s112, 1
      %s114 = scalar_select %p111, %s112, %s113
      %p117 = pneg %p111
      %p118 = scmp.eq.s32.totalorder %s13, 1
      %p119 = por %p117, %p118
      %p120 = scmp.ne.s32.totalorder %s112, %s115
      %p121 = scmp.eq.s32.totalorder %s13, 0
      %p122 = por %p120, %p121
      %p123 = scmp.ne.s32.totalorder %s112, %s115
      %p124 = scmp.eq.s32.totalorder %s18, 1
      %p125 = por %p123, %p124
      %p126 = scmp.ne.s32.totalorder %s115, %s116
      %p127 = scmp.eq.s32.totalorder %s18, 0
      %p128 = por %p126, %p127
      %p129 = scmp.ne.s32.totalorder %s115, %s116
      %p130 = scmp.eq.s32.totalorder %s19, 1
      %p131 = por %p129, %p130
      %p133 = scmp.ne.s32.totalorder %s116, %s132
      %p134 = scmp.eq.s32.totalorder %s19, 0
      %p135 = por %p133, %p134
      %p136 = scmp.le.s32.totalorder 1, %s13
      %p137 = scmp.lt.s32.totalorder %s13, 3
      %p138 = pnand %p136, %p137
      %p139 = pneg %p138
      // Predicated region
      $region9: #{tpu_custom_call.1} parent=5 // pred_check
        _
      $region10: #{tpu_custom_call.1} parent=5 // pred_check_branch
        %141 = sbr.rel (%p138) target = $region12
      $region11: #{tpu_custom_call.1} parent=5 // pred_region
        %s142 = ssub.s32 %s13, 1
        // Predicated region
        $region13: #{tpu_custom_call.1} parent=11 // pred_check
          %p143 = pneg %p60
        $region14: #{tpu_custom_call.1} parent=11 // pred_check_branch
          %145 = sbr.rel (%p143) target = $region16
        $region15: #{tpu_custom_call.1} parent=11 // pred_region
          _
        $region16: #{tpu_custom_call.1} parent=11 // pred_fallthru
          _
        // Predicated region
        $region17: #{tpu_custom_call.1} parent=11 // pred_check
          %p146 = pneg %p81
        $region18: #{tpu_custom_call.1} parent=11 // pred_check_branch
          %148 = sbr.rel (%p146) target = $region20
        $region19: #{tpu_custom_call.1} parent=11 // pred_region
          _
        $region20: #{tpu_custom_call.1} parent=11 // pred_fallthru
          _
        // Predicated region
        $region21: #{tpu_custom_call.1} parent=11 // pred_check
          %p149 = pneg %p102
        $region22: #{tpu_custom_call.1} parent=11 // pred_check_branch
          %151 = sbr.rel (%p149) target = $region24
        $region23: #{tpu_custom_call.1} parent=11 // pred_region
          _
        $region24: #{tpu_custom_call.1} parent=11 // pred_fallthru
          _
      $region12: #{tpu_custom_call.1} parent=5 // pred_fallthru
        _
      %p152 = scmp.lt.s32.totalorder %s13, 2
      // Predicated region
      $region25: #{tpu_custom_call.1} parent=5 // pred_check
        %p153 = pneg %p152
      $region26: #{tpu_custom_call.1} parent=5 // pred_check_branch
        %155 = sbr.rel (%p153) target = $region28
      $region27: #{tpu_custom_call.1} parent=5 // pred_region
        // Predicated region
        $region29: #{tpu_custom_call.1} parent=27 // pred_check
          %p156 = pneg %p33
        $region30: #{tpu_custom_call.1} parent=27 // pred_check_branch
          %158 = sbr.rel (%p156) target = $region32
        $region31: #{tpu_custom_call.1} parent=27 // pred_region
          %p159 = scmp.lt.s32.totalorder %s13, 1
          %s160 = scalar_select %p159, %s13, 1
          %s161 = smul.addr %s160, 8
          %s162 = scalar_lea.vmem %s0, %s161
        $region32: #{tpu_custom_call.1} parent=27 // pred_fallthru
          _
      $region28: #{tpu_custom_call.1} parent=5 // pred_fallthru
        _
      %p163 = scmp.le.s32.totalorder 1, %s13
      %p164 = scmp.lt.s32.totalorder %s13, 3
      %p165 = pnand %p163, %p164
      %p166 = pneg %p165
      // Predicated region
      $region33: #{tpu_custom_call.1} parent=5 // pred_check
        _
      $region34: #{tpu_custom_call.1} parent=5 // pred_check_branch
        %168 = sbr.rel (%p165) target = $region36
      $region35: #{tpu_custom_call.1} parent=5 // pred_region
        %s169 = ssub.s32 %s13, 1
        %p170 = scmp.lt.s32.totalorder %s18, 1
        %s171 = scalar_select %p170, %s18, 1
        %s172 = smul.addr %s171, 8
        %s173 = scalar_lea.vmem %s0, %s172
        %p174 = pneg %p39
        %p175 = pneg %p36
        %p176 = pneg %p60
        %p177 = pneg %p57
        %p178 = pneg %p81
        %p179 = pneg %p78
        %p180 = pneg %p102
        %p181 = pneg %p99
        %p182 = pneg %p128
        %p183 = pneg %p125
        %s184 = sand.u32 %s115, 1
        %s185 = scalar_lea.sflag [#allocation3], %s184
        %s186 = sand.u32 %s115, 1
        %s187 = smul.addr %s186, 8
        %s188 = scalar_lea.vmem [#allocation2], %s187
        %p189 = scmp.lt.s32.totalorder %s18, 1
        %s190 = scalar_select %p189, %s18, 1
        %s191 = smul.addr %s190, 8
        %s192 = scalar_lea.vmem %s0, %s191
        %v193 = vld [vmem:[%s192] sm:$0xff]
        %v194 = vld [vmem:[%s1] sm:$0xff]
        %v195 = vld [vmem:[%s1 + $0x8] sm:$0xff]
        %v196 = vld [vmem:[%s1 + $0x10] sm:$0xff]
        %v197 = vld [vmem:[%s1 + $0x18] sm:$0xff]
        %v198 = vld [vmem:[%s1 + $0x20] sm:$0xff]
        %v199 = vld [vmem:[%s1 + $0x28] sm:$0xff]
        %v200 = vld [vmem:[%s1 + $0x30] sm:$0xff]
        %v201 = vld [vmem:[%s1 + $0x38] sm:$0xff]
        %v202 = vld [vmem:[%s1 + $0x40] sm:$0xff]
        %v203 = vld [vmem:[%s1 + $0x48] sm:$0xff]
        %v204 = vld [vmem:[%s1 + $0x50] sm:$0xff]
        %v205 = vld [vmem:[%s1 + $0x58] sm:$0xff]
        %vm206 = vcmask 261120
        %v208 = vsel %vm206, %v194, 0
        %v211 = vsel %vm206, %v195, 0
        %v214 = vsel %vm206, %v196, 0
        %v217 = vsel %vm206, %v197, 0
        %v220 = vsel %vm206, %v198, 0
        %v223 = vsel %vm206, %v199, 0
        %v226 = vsel %vm206, %v200, 0
        %v229 = vsel %vm206, %v201, 0
        %v232 = vsel %vm206, %v202, 0
        %v235 = vsel %vm206, %v203, 0
        %v238 = vsel %vm206, %v204, 0
        %v241 = vsel %vm206, %v205, 0
        %v244 = vsel %vm206, %v193, 0
        %246 = vmatprep.subr.mxu0 0.0
        %247 = vmatpush1.xpose.msra.mxu0 %v244
        %248 = vmatprep.subr.mxu0 0.0
        %249 = vmatpush1.xpose.msra.mxu0 0.0
        %250 = vmatprep.subr.mxu0 0.0
        %251 = vmatpush1.xpose.msra.mxu0 0.0
        %252 = vmatprep.subr.mxu0 0.0
        %253 = vmatpush1.xpose.msra.mxu0 0.0
        %254 = vmatprep.subr.mxu0 0.0
        %255 = vmatpush1.xpose.msra.mxu0 0.0
        %256 = vmatprep.subr.mxu0 0.0
        %257 = vmatpush1.xpose.msra.mxu0 0.0
        %258 = vmatprep.subr.mxu0 0.0
        %259 = vmatpush1.xpose.msra.mxu0 0.0
        %260 = vmatprep.subr.mxu0 0.0
        %261 = vmatpush1.xpose.msra.mxu0 0.0
        %262 = vmatprep.subr.mxu0 0.0
        %263 = vmatpush1.xpose.msra.mxu0 0.0
        %264 = vmatprep.subr.mxu0 0.0
        %265 = vmatpush1.xpose.msra.mxu0 0.0
        %266 = vmatprep.subr.mxu0 0.0
        %267 = vmatpush1.xpose.msra.mxu0 0.0
        %268 = vmatprep.subr.mxu0 0.0
        %269 = vmatpush1.xpose.msra.mxu0 0.0
        %270 = vmatprep.subr.mxu0 0.0
        %271 = vmatpush1.xpose.msra.mxu0 0.0
        %272 = vmatprep.subr.mxu0 0.0
        %273 = vmatpush1.xpose.msra.mxu0 0.0
        %274 = vmatprep.subr.mxu0 0.0
        %275 = vmatpush1.xpose.msra.mxu0 0.0
        %276 = vmatprep.subr.mxu0 0.0
        %277 = vmatpush1.xpose.msra.mxu0 0.0
        %278 = vmatprep.subr.mxu0 0.0
        %279 = vmatpush1.xpose.msra.mxu0 0.0
        %280 = vmatprep.subr.mxu0 0.0
        %281 = vmatpush1.xpose.msra.mxu0 0.0
        %282 = vmatprep.subr.mxu0 0.0
        %283 = vmatpush1.xpose.msra.mxu0 0.0
        %284 = vmatprep.subr.mxu0 0.0
        %285 = vmatpush1.xpose.msra.mxu0 0.0
        %286 = vmatprep.subr.mxu0 0.0
        %287 = vmatpush1.xpose.msra.mxu0 0.0
        %288 = vmatprep.subr.mxu0 0.0
        %289 = vmatpush1.xpose.msra.mxu0 0.0
        %290 = vmatprep.subr.mxu0 0.0
        %291 = vmatpush1.xpose.msra.mxu0 0.0
        %292 = vmatprep.subr.mxu0 0.0
        %293 = vmatpush1.xpose.msra.mxu0 0.0
        %294 = vmatprep.subr.mxu0 0.0
        %295 = vmatpush1.xpose.msra.mxu0 0.0
        %296 = vmatprep.subr.mxu0 0.0
        %297 = vmatpush1.xpose.msra.mxu0 0.0
        %298 = vmatprep.subr.mxu0 0.0
        %299 = vmatpush1.xpose.msra.mxu0 0.0
        %300 = vmatprep.subr.mxu0 0.0
        %301 = vmatpush1.xpose.msra.mxu0 0.0
        %302 = vmatprep.subr.mxu0 0.0
        %303 = vmatpush1.xpose.msra.mxu0 0.0
        %304 = vmatprep.subr.mxu0 0.0
        %305 = vmatpush1.xpose.msra.mxu0 0.0
        %306 = vmatprep.subr.mxu0 0.0
        %307 = vmatpush1.xpose.msra.mxu0 0.0
        %308 = vmatprep.subr.mxu0 0.0
        %309 = vmatpush1.xpose.msra.mxu0 0.0
        %310 = vmatprep.mubr.f32.mxu0 0.0
        %311 = vmatmul.mubr.f32.gmra.mrb[0].mxu0 %v208
        %v312 = vpop.f32.mrb[0].mxu0
        %v313 = vadd.f32 0.0, %v312
        %v314 = vpop.f32.mrb[0].mxu0
        %315 = vmatprep.mubr.f32.mxu0 0.0
        %316 = vmatmul.mubr.f32.gmra.mrb[0].mxu0 %v211
        %v317 = vpop.f32.mrb[0].mxu0
        %v318 = vadd.f32 0.0, %v317
        %v319 = vpop.f32.mrb[0].mxu0
        %320 = vmatprep.mubr.f32.mxu0 0.0
        %321 = vmatmul.mubr.f32.gmra.mrb[0].mxu0 %v214
        %v322 = vpop.f32.mrb[0].mxu0
        %v323 = vadd.f32 0.0, %v322
        %v324 = vpop.f32.mrb[0].mxu0
        %325 = vmatprep.mubr.f32.mxu0 0.0
        %326 = vmatmul.mubr.f32.gmra.mrb[0].mxu0 %v217
        %v327 = vpop.f32.mrb[0].mxu0
        %v328 = vadd.f32 0.0, %v327
        %v329 = vpop.f32.mrb[0].mxu0
        %330 = vmatprep.mubr.f32.mxu0 0.0
        %331 = vmatmul.mubr.f32.gmra.mrb[0].mxu0 %v220
        %v332 = vpop.f32.mrb[0].mxu0
        %v333 = vadd.f32 0.0, %v332
        %v334 = vpop.f32.mrb[0].mxu0
        %335 = vmatprep.mubr.f32.mxu0 0.0
        %336 = vmatmul.mubr.f32.gmra.mrb[0].mxu0 %v223
        %v337 = vpop.f32.mrb[0].mxu0
        %v338 = vadd.f32 0.0, %v337
        %v339 = vpop.f32.mrb[0].mxu0
        %340 = vmatprep.mubr.f32.mxu0 0.0
        %341 = vmatmul.mubr.f32.gmra.mrb[0].mxu0 %v226
        %v342 = vpop.f32.mrb[0].mxu0
        %v343 = vadd.f32 0.0, %v342
        %v344 = vpop.f32.mrb[0].mxu0
        %345 = vmatprep.mubr.f32.mxu0 0.0
        %346 = vmatmul.mubr.f32.gmra.mrb[0].mxu0 %v229
        %v347 = vpop.f32.mrb[0].mxu0
        %v348 = vadd.f32 0.0, %v347
        %v349 = vpop.f32.mrb[0].mxu0
        %350 = vmatprep.mubr.f32.mxu0 0.0
        %351 = vmatmul.mubr.f32.gmra.mrb[0].mxu0 %v232
        %v352 = vpop.f32.mrb[0].mxu0
        %v353 = vadd.f32 0.0, %v352
        %v354 = vpop.f32.mrb[0].mxu0
        %355 = vmatprep.mubr.f32.mxu0 0.0
        %356 = vmatmul.mubr.f32.gmra.mrb[0].mxu0 %v235
        %v357 = vpop.f32.mrb[0].mxu0
        %v358 = vadd.f32 0.0, %v357
        %v359 = vpop.f32.mrb[0].mxu0
        %360 = vmatprep.mubr.f32.mxu0 0.0
        %361 = vmatmul.mubr.f32.gmra.mrb[0].mxu0 %v238
        %v362 = vpop.f32.mrb[0].mxu0
        %v363 = vadd.f32 0.0, %v362
        %v364 = vpop.f32.mrb[0].mxu0
        %365 = vmatprep.mubr.f32.mxu0 0.0
        %366 = vmatmul.mubr.f32.gmra.mrb[0].mxu0 %v241
        %v367 = vpop.f32.mrb[0].mxu0
        %v368 = vadd.f32 0.0, %v367
        %v369 = vpop.f32.mrb[0].mxu0
        %370 = vdwg.mxu0
        %v371 = vld [vmem:[%s3] sm:$0xff]
        %v372 = vld [vmem:[%s3 + $0x8] sm:$0xff]
        %v373 = vld [vmem:[%s3 + $0x10] sm:$0xff]
        %v374 = vld [vmem:[%s3 + $0x18] sm:$0xff]
        %v375 = vld [vmem:[%s2] sm:$0xff]
        %v376 = vld [vmem:[%s2 + $0x8] sm:$0xff]
        %v377 = vld [vmem:[%s2 + $0x10] sm:$0xff]
        %v378 = vld [vmem:[%s2 + $0x18] sm:$0xff]
        %379 = vxpose.xlu0.b32.start [1/16] %v313, 128
        %380 = vxpose.xlu0.b32.cont [2/16] 0.0, 128
        %381 = vxpose.xlu0.b32.cont [3/16] 0.0, 128
        %382 = vxpose.xlu0.b32.cont [4/16] 0.0, 128
        %383 = vxpose.xlu0.b32.cont [5/16] 0.0, 128
        %384 = vxpose.xlu0.b32.cont [6/16] 0.0, 128
        %385 = vxpose.xlu0.b32.cont [7/16] 0.0, 128
        %386 = vxpose.xlu0.b32.cont [8/16] 0.0, 128
        %387 = vxpose.xlu0.b32.cont [9/16] 0.0, 128
        %388 = vxpose.xlu0.b32.cont [10/16] 0.0, 128
        %389 = vxpose.xlu0.b32.cont [11/16] 0.0, 128
        %390 = vxpose.xlu0.b32.cont [12/16] 0.0, 128
        %391 = vxpose.xlu0.b32.cont [13/16] 0.0, 128
        %392 = vxpose.xlu0.b32.cont [14/16] 0.0, 128
        %393 = vxpose.xlu0.b32.cont [15/16] 0.0, 128
        %394 = vxpose.xlu0.b32.end [16/16] 0.0, 128
        %v395 = vpop.trf.xlu0
        %v396 = vpop.trf.xlu0
        %v397 = vpop.trf.xlu0
        %v398 = vpop.trf.xlu0
        %v399 = vpop.trf.xlu0
        %v400 = vpop.trf.xlu0
        %v401 = vpop.trf.xlu0
        %v402 = vpop.trf.xlu0
        %v403 = vpop.trf.xlu0
        %v404 = vpop.trf.xlu0
        %v405 = vpop.trf.xlu0
        %v406 = vpop.trf.xlu0
        %v407 = vpop.trf.xlu0
        %v408 = vpop.trf.xlu0
        %v409 = vpop.trf.xlu0
        %v410 = vpop.trf.xlu0
        %vm411 = vcmask 64512
        %v413 = vsel %vm411, %v395, 0
        %415 = vmatprep.subr.mxu0 0.0
        %416 = vmatpush1.msra.mxu0 %v333
        %417 = vmatprep.subr.mxu0 0.0
        %418 = vmatpush1.msra.mxu0 0.0
        %419 = vmatprep.subr.mxu0 0.0
        %420 = vmatpush1.msra.mxu0 0.0
        %421 = vmatprep.subr.mxu0 0.0
        %422 = vmatpush1.msra.mxu0 0.0
        %423 = vmatprep.subr.mxu0 0.0
        %424 = vmatpush1.msra.mxu0 0.0
        %425 = vmatprep.subr.mxu0 0.0
        %426 = vmatpush1.msra.mxu0 0.0
        %427 = vmatprep.subr.mxu0 0.0
        %428 = vmatpush1.msra.mxu0 0.0
        %429 = vmatprep.subr.mxu0 0.0
        %430 = vmatpush1.msra.mxu0 0.0
        %431 = vmatprep.subr.mxu0 0.0
        %432 = vmatpush1.msra.mxu0 0.0
        %433 = vmatprep.subr.mxu0 0.0
        %434 = vmatpush1.msra.mxu0 0.0
        %435 = vmatprep.subr.mxu0 0.0
        %436 = vmatpush1.msra.mxu0 0.0
        %437 = vmatprep.subr.mxu0 0.0
        %438 = vmatpush1.msra.mxu0 0.0
        %439 = vmatprep.subr.mxu0 0.0
        %440 = vmatpush1.msra.mxu0 0.0
        %441 = vmatprep.subr.mxu0 0.0
        %442 = vmatpush1.msra.mxu0 0.0
        %443 = vmatprep.subr.mxu0 0.0
        %444 = vmatpush1.msra.mxu0 0.0
        %445 = vmatprep.subr.mxu0 0.0
        %446 = vmatpush1.msra.mxu0 0.0
        %447 = vmatprep.subr.mxu0 0.0
        %448 = vmatpush1.msra.mxu0 0.0
        %449 = vmatprep.subr.mxu0 0.0
        %450 = vmatpush1.msra.mxu0 0.0
        %451 = vmatprep.subr.mxu0 0.0
        %452 = vmatpush1.msra.mxu0 0.0
        %453 = vmatprep.subr.mxu0 0.0
        %454 = vmatpush1.msra.mxu0 0.0
        %455 = vmatprep.subr.mxu0 0.0
        %456 = vmatpush1.msra.mxu0 0.0
        %457 = vmatprep.subr.mxu0 0.0
        %458 = vmatpush1.msra.mxu0 0.0
        %459 = vmatprep.subr.mxu0 0.0
        %460 = vmatpush1.msra.mxu0 0.0
        %461 = vmatprep.subr.mxu0 0.0
        %462 = vmatpush1.msra.mxu0 0.0
        %463 = vmatprep.subr.mxu0 0.0
        %464 = vmatpush1.msra.mxu0 0.0
        %465 = vmatprep.subr.mxu0 0.0
        %466 = vmatpush1.msra.mxu0 0.0
        %467 = vmatprep.subr.mxu0 0.0
        %468 = vmatpush1.msra.mxu0 0.0
        %469 = vmatprep.subr.mxu0 0.0
        %470 = vmatpush1.msra.mxu0 0.0
        %471 = vmatprep.subr.mxu0 0.0
        %472 = vmatpush1.msra.mxu0 0.0
        %473 = vmatprep.subr.mxu0 0.0
        %474 = vmatpush1.msra.mxu0 0.0
        %475 = vmatprep.subr.mxu0 0.0
        %476 = vmatpush1.msra.mxu0 0.0
        %477 = vmatprep.subr.mxu0 0.0
        %478 = vmatpush1.msra.mxu0 0.0
        %479 = vmatprep.mubr.f32.mxu0 0.0
        %480 = vmatmul.mubr.f32.gmra.mrb[0].mxu0 %v413
        %v481 = vpop.f32.mrb[0].mxu0
        %v482 = vadd.f32 %v371, %v481
        %v483 = vpop.f32.mrb[0].mxu0
        %484 = vdwg.mxu0
        %v485 = vsel %vm411, %v482, -inf
        %486 = vmax.xlane.f32.xlu0 %v485
        %v487 = vpop.xlane.xlu0 %486
        %v488 = vsub.f32 %v482, %v487
        %v489 = vmul.f32 %v488, 1.442695
        %v490 = vpow.pop %v489
        %v491 = vsel %vm411, %v490, 0.0
        %492 = vadd.xlane.f32.xlu0 %v491
        %v493 = vpop.xlane.xlu0 %492
        %v494 = vrcp.pop %v493
        %v495 = vmul.f32 %v493, %v494
        %v496 = vsub.f32 2.0, %v495
        %v497 = vmul.f32 %v494, %v496
        %v498 = vmul.f32 %v490, %v497
        %v500 = vsel %vm411, %v498, 0
        %v503 = vsel %vm411, %v353, 0
        %505 = vmatprep.subr.mxu0 0.0
        %506 = vmatpush1.xpose.msra.mxu0 %v503
        %507 = vmatprep.subr.mxu0 0.0
        %508 = vmatpush1.xpose.msra.mxu0 0.0
        %509 = vmatprep.subr.mxu0 0.0
        %510 = vmatpush1.xpose.msra.mxu0 0.0
        %511 = vmatprep.subr.mxu0 0.0
        %512 = vmatpush1.xpose.msra.mxu0 0.0
        %513 = vmatprep.subr.mxu0 0.0
        %514 = vmatpush1.xpose.msra.mxu0 0.0
        %515 = vmatprep.subr.mxu0 0.0
        %516 = vmatpush1.xpose.msra.mxu0 0.0
        %517 = vmatprep.subr.mxu0 0.0
        %518 = vmatpush1.xpose.msra.mxu0 0.0
        %519 = vmatprep.subr.mxu0 0.0
        %520 = vmatpush1.xpose.msra.mxu0 0.0
        %521 = vmatprep.subr.mxu0 0.0
        %522 = vmatpush1.xpose.msra.mxu0 0.0
        %523 = vmatprep.subr.mxu0 0.0
        %524 = vmatpush1.xpose.msra.mxu0 0.0
        %525 = vmatprep.subr.mxu0 0.0
        %526 = vmatpush1.xpose.msra.mxu0 0.0
        %527 = vmatprep.subr.mxu0 0.0
        %528 = vmatpush1.xpose.msra.mxu0 0.0
        %529 = vmatprep.subr.mxu0 0.0
        %530 = vmatpush1.xpose.msra.mxu0 0.0
        %531 = vmatprep.subr.mxu0 0.0
        %532 = vmatpush1.xpose.msra.mxu0 0.0
        %533 = vmatprep.subr.mxu0 0.0
        %534 = vmatpush1.xpose.msra.mxu0 0.0
        %535 = vmatprep.subr.mxu0 0.0
        %536 = vmatpush1.xpose.msra.mxu0 0.0
        %537 = vmatprep.subr.mxu0 0.0
        %538 = vmatpush1.xpose.msra.mxu0 0.0
        %539 = vmatprep.subr.mxu0 0.0
        %540 = vmatpush1.xpose.msra.mxu0 0.0
        %541 = vmatprep.subr.mxu0 0.0
        %542 = vmatpush1.xpose.msra.mxu0 0.0
        %543 = vmatprep.subr.mxu0 0.0
        %544 = vmatpush1.xpose.msra.mxu0 0.0
        %545 = vmatprep.subr.mxu0 0.0
        %546 = vmatpush1.xpose.msra.mxu0 0.0
        %547 = vmatprep.subr.mxu0 0.0
        %548 = vmatpush1.xpose.msra.mxu0 0.0
        %549 = vmatprep.subr.mxu0 0.0
        %550 = vmatpush1.xpose.msra.mxu0 0.0
        %551 = vmatprep.subr.mxu0 0.0
        %552 = vmatpush1.xpose.msra.mxu0 0.0
        %553 = vmatprep.subr.mxu0 0.0
        %554 = vmatpush1.xpose.msra.mxu0 0.0
        %555 = vmatprep.subr.mxu0 0.0
        %556 = vmatpush1.xpose.msra.mxu0 0.0
        %557 = vmatprep.subr.mxu0 0.0
        %558 = vmatpush1.xpose.msra.mxu0 0.0
        %559 = vmatprep.subr.mxu0 0.0
        %560 = vmatpush1.xpose.msra.mxu0 0.0
        %561 = vmatprep.subr.mxu0 0.0
        %562 = vmatpush1.xpose.msra.mxu0 0.0
        %563 = vmatprep.subr.mxu0 0.0
        %564 = vmatpush1.xpose.msra.mxu0 0.0
        %565 = vmatprep.subr.mxu0 0.0
        %566 = vmatpush1.xpose.msra.mxu0 0.0
        %567 = vmatprep.subr.mxu0 0.0
        %568 = vmatpush1.xpose.msra.mxu0 0.0
        %569 = vmatprep.mubr.f32.mxu0 0.0
        %570 = vmatmul.mubr.f32.gmra.mrb[0].mxu0 %v500
        %v571 = vpop.f32.mrb[0].mxu0
        %v572 = vadd.f32 0.0, %v571
        %v573 = vpop.f32.mrb[0].mxu0
        %574 = vdwg.mxu0
        %575 = vxpose.xlu0.b32.start [1/16] %v318, 128
        %576 = vxpose.xlu0.b32.cont [2/16] 0.0, 128
        %577 = vxpose.xlu0.b32.cont [3/16] 0.0, 128
        %578 = vxpose.xlu0.b32.cont [4/16] 0.0, 128
        %579 = vxpose.xlu0.b32.cont [5/16] 0.0, 128
        %580 = vxpose.xlu0.b32.cont [6/16] 0.0, 128
        %581 = vxpose.xlu0.b32.cont [7/16] 0.0, 128
        %582 = vxpose.xlu0.b32.cont [8/16] 0.0, 128
        %583 = vxpose.xlu0.b32.cont [9/16] 0.0, 128
        %584 = vxpose.xlu0.b32.cont [10/16] 0.0, 128
        %585 = vxpose.xlu0.b32.cont [11/16] 0.0, 128
        %586 = vxpose.xlu0.b32.cont [12/16] 0.0, 128
        %587 = vxpose.xlu0.b32.cont [13/16] 0.0, 128
        %588 = vxpose.xlu0.b32.cont [14/16] 0.0, 128
        %589 = vxpose.xlu0.b32.cont [15/16] 0.0, 128
        %590 = vxpose.xlu0.b32.end [16/16] 0.0, 128
        %v591 = vpop.trf.xlu0
        %v592 = vpop.trf.xlu0
        %v593 = vpop.trf.xlu0
        %v594 = vpop.trf.xlu0
        %v595 = vpop.trf.xlu0
        %v596 = vpop.trf.xlu0
        %v597 = vpop.trf.xlu0
        %v598 = vpop.trf.xlu0
        %v599 = vpop.trf.xlu0
        %v600 = vpop.trf.xlu0
        %v601 = vpop.trf.xlu0
        %v602 = vpop.trf.xlu0
        %v603 = vpop.trf.xlu0
        %v604 = vpop.trf.xlu0
        %v605 = vpop.trf.xlu0
        %v606 = vpop.trf.xlu0
        %v608 = vsel %vm411, %v591, 0
        %610 = vmatprep.subr.mxu0 0.0
        %611 = vmatpush1.msra.mxu0 %v338
        %612 = vmatprep.subr.mxu0 0.0
        %613 = vmatpush1.msra.mxu0 0.0
        %614 = vmatprep.subr.mxu0 0.0
        %615 = vmatpush1.msra.mxu0 0.0
        %616 = vmatprep.subr.mxu0 0.0
        %617 = vmatpush1.msra.mxu0 0.0
        %618 = vmatprep.subr.mxu0 0.0
        %619 = vmatpush1.msra.mxu0 0.0
        %620 = vmatprep.subr.mxu0 0.0
        %621 = vmatpush1.msra.mxu0 0.0
        %622 = vmatprep.subr.mxu0 0.0
        %623 = vmatpush1.msra.mxu0 0.0
        %624 = vmatprep.subr.mxu0 0.0
        %625 = vmatpush1.msra.mxu0 0.0
        %626 = vmatprep.subr.mxu0 0.0
        %627 = vmatpush1.msra.mxu0 0.0
        %628 = vmatprep.subr.mxu0 0.0
        %629 = vmatpush1.msra.mxu0 0.0
        %630 = vmatprep.subr.mxu0 0.0
        %631 = vmatpush1.msra.mxu0 0.0
        %632 = vmatprep.subr.mxu0 0.0
        %633 = vmatpush1.msra.mxu0 0.0
        %634 = vmatprep.subr.mxu0 0.0
        %635 = vmatpush1.msra.mxu0 0.0
        %636 = vmatprep.subr.mxu0 0.0
        %637 = vmatpush1.msra.mxu0 0.0
        %638 = vmatprep.subr.mxu0 0.0
        %639 = vmatpush1.msra.mxu0 0.0
        %640 = vmatprep.subr.mxu0 0.0
        %641 = vmatpush1.msra.mxu0 0.0
        %642 = vmatprep.subr.mxu0 0.0
        %643 = vmatpush1.msra.mxu0 0.0
        %644 = vmatprep.subr.mxu0 0.0
        %645 = vmatpush1.msra.mxu0 0.0
        %646 = vmatprep.subr.mxu0 0.0
        %647 = vmatpush1.msra.mxu0 0.0
        %648 = vmatprep.subr.mxu0 0.0
        %649 = vmatpush1.msra.mxu0 0.0
        %650 = vmatprep.subr.mxu0 0.0
        %651 = vmatpush1.msra.mxu0 0.0
        %652 = vmatprep.subr.mxu0 0.0
        %653 = vmatpush1.msra.mxu0 0.0
        %654 = vmatprep.subr.mxu0 0.0
        %655 = vmatpush1.msra.mxu0 0.0
        %656 = vmatprep.subr.mxu0 0.0
        %657 = vmatpush1.msra.mxu0 0.0
        %658 = vmatprep.subr.mxu0 0.0
        %659 = vmatpush1.msra.mxu0 0.0
        %660 = vmatprep.subr.mxu0 0.0
        %661 = vmatpush1.msra.mxu0 0.0
        %662 = vmatprep.subr.mxu0 0.0
        %663 = vmatpush1.msra.mxu0 0.0
        %664 = vmatprep.subr.mxu0 0.0
        %665 = vmatpush1.msra.mxu0 0.0
        %666 = vmatprep.subr.mxu0 0.0
        %667 = vmatpush1.msra.mxu0 0.0
        %668 = vmatprep.subr.mxu0 0.0
        %669 = vmatpush1.msra.mxu0 0.0
        %670 = vmatprep.subr.mxu0 0.0
        %671 = vmatpush1.msra.mxu0 0.0
        %672 = vmatprep.subr.mxu0 0.0
        %673 = vmatpush1.msra.mxu0 0.0
        %674 = vmatprep.mubr.f32.mxu0 0.0
        %675 = vmatmul.mubr.f32.gmra.mrb[0].mxu0 %v608
        %v676 = vpop.f32.mrb[0].mxu0
        %v677 = vadd.f32 %v372, %v676
        %v678 = vpop.f32.mrb[0].mxu0
        %679 = vdwg.mxu0
        %v680 = vsel %vm411, %v677, -inf
        %681 = vmax.xlane.f32.xlu0 %v680
        %v682 = vpop.xlane.xlu0 %681
        %v683 = vsub.f32 %v677, %v682
        %v684 = vmul.f32 %v683, 1.442695
        %v685 = vpow.pop %v684
        %v686 = vsel %vm411, %v685, 0.0
        %687 = vadd.xlane.f32.xlu0 %v686
        %v688 = vpop.xlane.xlu0 %687
        %v689 = vrcp.pop %v688
        %v690 = vmul.f32 %v688, %v689
        %v691 = vsub.f32 2.0, %v690
        %v692 = vmul.f32 %v689, %v691
        %v693 = vmul.f32 %v685, %v692
        %v695 = vsel %vm411, %v693, 0
        %v698 = vsel %vm411, %v358, 0
        %700 = vmatprep.subr.mxu0 0.0
        %701 = vmatpush1.xpose.msra.mxu0 %v698
        %702 = vmatprep.subr.mxu0 0.0
        %703 = vmatpush1.xpose.msra.mxu0 0.0
        %704 = vmatprep.subr.mxu0 0.0
        %705 = vmatpush1.xpose.msra.mxu0 0.0
        %706 = vmatprep.subr.mxu0 0.0
        %707 = vmatpush1.xpose.msra.mxu0 0.0
        %708 = vmatprep.subr.mxu0 0.0
        %709 = vmatpush1.xpose.msra.mxu0 0.0
        %710 = vmatprep.subr.mxu0 0.0
        %711 = vmatpush1.xpose.msra.mxu0 0.0
        %712 = vmatprep.subr.mxu0 0.0
        %713 = vmatpush1.xpose.msra.mxu0 0.0
        %714 = vmatprep.subr.mxu0 0.0
        %715 = vmatpush1.xpose.msra.mxu0 0.0
        %716 = vmatprep.subr.mxu0 0.0
        %717 = vmatpush1.xpose.msra.mxu0 0.0
        %718 = vmatprep.subr.mxu0 0.0
        %719 = vmatpush1.xpose.msra.mxu0 0.0
        %720 = vmatprep.subr.mxu0 0.0
        %721 = vmatpush1.xpose.msra.mxu0 0.0
        %722 = vmatprep.subr.mxu0 0.0
        %723 = vmatpush1.xpose.msra.mxu0 0.0
        %724 = vmatprep.subr.mxu0 0.0
        %725 = vmatpush1.xpose.msra.mxu0 0.0
        %726 = vmatprep.subr.mxu0 0.0
        %727 = vmatpush1.xpose.msra.mxu0 0.0
        %728 = vmatprep.subr.mxu0 0.0
        %729 = vmatpush1.xpose.msra.mxu0 0.0
        %730 = vmatprep.subr.mxu0 0.0
        %731 = vmatpush1.xpose.msra.mxu0 0.0
        %732 = vmatprep.subr.mxu0 0.0
        %733 = vmatpush1.xpose.msra.mxu0 0.0
        %734 = vmatprep.subr.mxu0 0.0
        %735 = vmatpush1.xpose.msra.mxu0 0.0
        %736 = vmatprep.subr.mxu0 0.0
        %737 = vmatpush1.xpose.msra.mxu0 0.0
        %738 = vmatprep.subr.mxu0 0.0
        %739 = vmatpush1.xpose.msra.mxu0 0.0
        %740 = vmatprep.subr.mxu0 0.0
        %741 = vmatpush1.xpose.msra.mxu0 0.0
        %742 = vmatprep.subr.mxu0 0.0
        %743 = vmatpush1.xpose.msra.mxu0 0.0
        %744 = vmatprep.subr.mxu0 0.0
        %745 = vmatpush1.xpose.msra.mxu0 0.0
        %746 = vmatprep.subr.mxu0 0.0
        %747 = vmatpush1.xpose.msra.mxu0 0.0
        %748 = vmatprep.subr.mxu0 0.0
        %749 = vmatpush1.xpose.msra.mxu0 0.0
        %750 = vmatprep.subr.mxu0 0.0
        %751 = vmatpush1.xpose.msra.mxu0 0.0
        %752 = vmatprep.subr.mxu0 0.0
        %753 = vmatpush1.xpose.msra.mxu0 0.0
        %754 = vmatprep.subr.mxu0 0.0
        %755 = vmatpush1.xpose.msra.mxu0 0.0
        %756 = vmatprep.subr.mxu0 0.0
        %757 = vmatpush1.xpose.msra.mxu0 0.0
        %758 = vmatprep.subr.mxu0 0.0
        %759 = vmatpush1.xpose.msra.mxu0 0.0
        %760 = vmatprep.subr.mxu0 0.0
        %761 = vmatpush1.xpose.msra.mxu0 0.0
        %762 = vmatprep.subr.mxu0 0.0
        %763 = vmatpush1.xpose.msra.mxu0 0.0
        %764 = vmatprep.mubr.f32.mxu0 0.0
        %765 = vmatmul.mubr.f32.gmra.mrb[0].mxu0 %v695
        %v766 = vpop.f32.mrb[0].mxu0
        %v767 = vadd.f32 0.0, %v766
        %v768 = vpop.f32.mrb[0].mxu0
        %769 = vdwg.mxu0
        %v771 = vsel %vm411, %v767, 0
        %773 = vmatprep.subr.mxu0 0.0
        %774 = vmatpush1.msra.mxu0 %v376
        %775 = vmatprep.subr.mxu0 0.0
        %776 = vmatpush1.msra.mxu0 0.0
        %777 = vmatprep.subr.mxu0 0.0
        %778 = vmatpush1.msra.mxu0 0.0
        %779 = vmatprep.subr.mxu0 0.0
        %780 = vmatpush1.msra.mxu0 0.0
        %781 = vmatprep.subr.mxu0 0.0
        %782 = vmatpush1.msra.mxu0 0.0
        %783 = vmatprep.subr.mxu0 0.0
        %784 = vmatpush1.msra.mxu0 0.0
        %785 = vmatprep.subr.mxu0 0.0
        %786 = vmatpush1.msra.mxu0 0.0
        %787 = vmatprep.subr.mxu0 0.0
        %788 = vmatpush1.msra.mxu0 0.0
        %789 = vmatprep.subr.mxu0 0.0
        %790 = vmatpush1.msra.mxu0 0.0
        %791 = vmatprep.subr.mxu0 0.0
        %792 = vmatpush1.msra.mxu0 0.0
        %793 = vmatprep.subr.mxu0 0.0
        %794 = vmatpush1.msra.mxu0 0.0
        %795 = vmatprep.subr.mxu0 0.0
        %796 = vmatpush1.msra.mxu0 0.0
        %797 = vmatprep.subr.mxu0 0.0
        %798 = vmatpush1.msra.mxu0 0.0
        %799 = vmatprep.subr.mxu0 0.0
        %800 = vmatpush1.msra.mxu0 0.0
        %801 = vmatprep.subr.mxu0 0.0
        %802 = vmatpush1.msra.mxu0 0.0
        %803 = vmatprep.subr.mxu0 0.0
        %804 = vmatpush1.msra.mxu0 0.0
        %805 = vmatprep.subr.mxu0 0.0
        %806 = vmatpush1.msra.mxu0 0.0
        %807 = vmatprep.subr.mxu0 0.0
        %808 = vmatpush1.msra.mxu0 0.0
        %809 = vmatprep.subr.mxu0 0.0
        %810 = vmatpush1.msra.mxu0 0.0
        %811 = vmatprep.subr.mxu0 0.0
        %812 = vmatpush1.msra.mxu0 0.0
        %813 = vmatprep.subr.mxu0 0.0
        %814 = vmatpush1.msra.mxu0 0.0
        %815 = vmatprep.subr.mxu0 0.0
        %816 = vmatpush1.msra.mxu0 0.0
        %817 = vmatprep.subr.mxu0 0.0
        %818 = vmatpush1.msra.mxu0 0.0
        %819 = vmatprep.subr.mxu0 0.0
        %820 = vmatpush1.msra.mxu0 0.0
        %821 = vmatprep.subr.mxu0 0.0
        %822 = vmatpush1.msra.mxu0 0.0
        %823 = vmatprep.subr.mxu0 0.0
        %824 = vmatpush1.msra.mxu0 0.0
        %825 = vmatprep.subr.mxu0 0.0
        %826 = vmatpush1.msra.mxu0 0.0
        %827 = vmatprep.subr.mxu0 0.0
        %828 = vmatpush1.msra.mxu0 0.0
        %829 = vmatprep.subr.mxu0 0.0
        %830 = vmatpush1.msra.mxu0 0.0
        %831 = vmatprep.subr.mxu0 0.0
        %832 = vmatpush1.msra.mxu0 0.0
        %833 = vmatprep.subr.mxu0 0.0
        %834 = vmatpush1.msra.mxu0 0.0
        %835 = vmatprep.subr.mxu0 0.0
        %836 = vmatpush1.msra.mxu0 0.0
        %837 = vmatprep.mubr.f32.mxu0 0.0
        %838 = vmatmul.mubr.f32.gmra.mrb[0].mxu0 %v771
        %v839 = vpop.f32.mrb[0].mxu0
        %v840 = vadd.f32 0.0, %v839
        %v841 = vpop.f32.mrb[0].mxu0
        %842 = vdwg.mxu0
        %v844 = vsel %vm411, %v572, 0
        %846 = vmatprep.subr.mxu0 0.0
        %847 = vmatpush1.msra.mxu0 %v375
        %848 = vmatprep.subr.mxu0 0.0
        %849 = vmatpush1.msra.mxu0 0.0
        %850 = vmatprep.subr.mxu0 0.0
        %851 = vmatpush1.msra.mxu0 0.0
        %852 = vmatprep.subr.mxu0 0.0
        %853 = vmatpush1.msra.mxu0 0.0
        %854 = vmatprep.subr.mxu0 0.0
        %855 = vmatpush1.msra.mxu0 0.0
        %856 = vmatprep.subr.mxu0 0.0
        %857 = vmatpush1.msra.mxu0 0.0
        %858 = vmatprep.subr.mxu0 0.0
        %859 = vmatpush1.msra.mxu0 0.0
        %860 = vmatprep.subr.mxu0 0.0
        %861 = vmatpush1.msra.mxu0 0.0
        %862 = vmatprep.subr.mxu0 0.0
        %863 = vmatpush1.msra.mxu0 0.0
        %864 = vmatprep.subr.mxu0 0.0
        %865 = vmatpush1.msra.mxu0 0.0
        %866 = vmatprep.subr.mxu0 0.0
        %867 = vmatpush1.msra.mxu0 0.0
        %868 = vmatprep.subr.mxu0 0.0
        %869 = vmatpush1.msra.mxu0 0.0
        %870 = vmatprep.subr.mxu0 0.0
        %871 = vmatpush1.msra.mxu0 0.0
        %872 = vmatprep.subr.mxu0 0.0
        %873 = vmatpush1.msra.mxu0 0.0
        %874 = vmatprep.subr.mxu0 0.0
        %875 = vmatpush1.msra.mxu0 0.0
        %876 = vmatprep.subr.mxu0 0.0
        %877 = vmatpush1.msra.mxu0 0.0
        %878 = vmatprep.subr.mxu0 0.0
        %879 = vmatpush1.msra.mxu0 0.0
        %880 = vmatprep.subr.mxu0 0.0
        %881 = vmatpush1.msra.mxu0 0.0
        %882 = vmatprep.subr.mxu0 0.0
        %883 = vmatpush1.msra.mxu0 0.0
        %884 = vmatprep.subr.mxu0 0.0
        %885 = vmatpush1.msra.mxu0 0.0
        %886 = vmatprep.subr.mxu0 0.0
        %887 = vmatpush1.msra.mxu0 0.0
        %888 = vmatprep.subr.mxu0 0.0
        %889 = vmatpush1.msra.mxu0 0.0
        %890 = vmatprep.subr.mxu0 0.0
        %891 = vmatpush1.msra.mxu0 0.0
        %892 = vmatprep.subr.mxu0 0.0
        %893 = vmatpush1.msra.mxu0 0.0
        %894 = vmatprep.subr.mxu0 0.0
        %895 = vmatpush1.msra.mxu0 0.0
        %896 = vmatprep.subr.mxu0 0.0
        %897 = vmatpush1.msra.mxu0 0.0
        %898 = vmatprep.subr.mxu0 0.0
        %899 = vmatpush1.msra.mxu0 0.0
        %900 = vmatprep.subr.mxu0 0.0
        %901 = vmatpush1.msra.mxu0 0.0
        %902 = vmatprep.subr.mxu0 0.0
        %903 = vmatpush1.msra.mxu0 0.0
        %904 = vmatprep.subr.mxu0 0.0
        %905 = vmatpush1.msra.mxu0 0.0
        %906 = vmatprep.subr.mxu0 0.0
        %907 = vmatpush1.msra.mxu0 0.0
        %908 = vmatprep.subr.mxu0 0.0
        %909 = vmatpush1.msra.mxu0 0.0
        %910 = vmatprep.mubr.f32.mxu0 0.0
        %911 = vmatmul.mubr.f32.gmra.mrb[0].mxu0 %v844
        %v912 = vpop.f32.mrb[0].mxu0
        %v913 = vadd.f32 %v840, %v912
        %v914 = vpop.f32.mrb[0].mxu0
        %915 = vdwg.mxu0
        %916 = vxpose.xlu0.b32.start [1/16] %v323, 128
        %917 = vxpose.xlu0.b32.cont [2/16] 0.0, 128
        %918 = vxpose.xlu0.b32.cont [3/16] 0.0, 128
        %919 = vxpose.xlu0.b32.cont [4/16] 0.0, 128
        %920 = vxpose.xlu0.b32.cont [5/16] 0.0, 128
        %921 = vxpose.xlu0.b32.cont [6/16] 0.0, 128
        %922 = vxpose.xlu0.b32.cont [7/16] 0.0, 128
        %923 = vxpose.xlu0.b32.cont [8/16] 0.0, 128
        %924 = vxpose.xlu0.b32.cont [9/16] 0.0, 128
        %925 = vxpose.xlu0.b32.cont [10/16] 0.0, 128
        %926 = vxpose.xlu0.b32.cont [11/16] 0.0, 128
        %927 = vxpose.xlu0.b32.cont [12/16] 0.0, 128
        %928 = vxpose.xlu0.b32.cont [13/16] 0.0, 128
        %929 = vxpose.xlu0.b32.cont [14/16] 0.0, 128
        %930 = vxpose.xlu0.b32.cont [15/16] 0.0, 128
        %931 = vxpose.xlu0.b32.end [16/16] 0.0, 128
        %v932 = vpop.trf.xlu0
        %v933 = vpop.trf.xlu0
        %v934 = vpop.trf.xlu0
        %v935 = vpop.trf.xlu0
        %v936 = vpop.trf.xlu0
        %v937 = vpop.trf.xlu0
        %v938 = vpop.trf.xlu0
        %v939 = vpop.trf.xlu0
        %v940 = vpop.trf.xlu0
        %v941 = vpop.trf.xlu0
        %v942 = vpop.trf.xlu0
        %v943 = vpop.trf.xlu0
        %v944 = vpop.trf.xlu0
        %v945 = vpop.trf.xlu0
        %v946 = vpop.trf.xlu0
        %v947 = vpop.trf.xlu0
        %v949 = vsel %vm411, %v932, 0
        %951 = vmatprep.subr.mxu0 0.0
        %952 = vmatpush1.msra.mxu0 %v343
        %953 = vmatprep.subr.mxu0 0.0
        %954 = vmatpush1.msra.mxu0 0.0
        %955 = vmatprep.subr.mxu0 0.0
        %956 = vmatpush1.msra.mxu0 0.0
        %957 = vmatprep.subr.mxu0 0.0
        %958 = vmatpush1.msra.mxu0 0.0
        %959 = vmatprep.subr.mxu0 0.0
        %960 = vmatpush1.msra.mxu0 0.0
        %961 = vmatprep.subr.mxu0 0.0
        %962 = vmatpush1.msra.mxu0 0.0
        %963 = vmatprep.subr.mxu0 0.0
        %964 = vmatpush1.msra.mxu0 0.0
        %965 = vmatprep.subr.mxu0 0.0
        %966 = vmatpush1.msra.mxu0 0.0
        %967 = vmatprep.subr.mxu0 0.0
        %968 = vmatpush1.msra.mxu0 0.0
        %969 = vmatprep.subr.mxu0 0.0
        %970 = vmatpush1.msra.mxu0 0.0
        %971 = vmatprep.subr.mxu0 0.0
        %972 = vmatpush1.msra.mxu0 0.0
        %973 = vmatprep.subr.mxu0 0.0
        %974 = vmatpush1.msra.mxu0 0.0
        %975 = vmatprep.subr.mxu0 0.0
        %976 = vmatpush1.msra.mxu0 0.0
        %977 = vmatprep.subr.mxu0 0.0
        %978 = vmatpush1.msra.mxu0 0.0
        %979 = vmatprep.subr.mxu0 0.0
        %980 = vmatpush1.msra.mxu0 0.0
        %981 = vmatprep.subr.mxu0 0.0
        %982 = vmatpush1.msra.mxu0 0.0
        %983 = vmatprep.subr.mxu0 0.0
        %984 = vmatpush1.msra.mxu0 0.0
        %985 = vmatprep.subr.mxu0 0.0
        %986 = vmatpush1.msra.mxu0 0.0
        %987 = vmatprep.subr.mxu0 0.0
        %988 = vmatpush1.msra.mxu0 0.0
        %989 = vmatprep.subr.mxu0 0.0
        %990 = vmatpush1.msra.mxu0 0.0
        %991 = vmatprep.subr.mxu0 0.0
        %992 = vmatpush1.msra.mxu0 0.0
        %993 = vmatprep.subr.mxu0 0.0
        %994 = vmatpush1.msra.mxu0 0.0
        %995 = vmatprep.subr.mxu0 0.0
        %996 = vmatpush1.msra.mxu0 0.0
        %997 = vmatprep.subr.mxu0 0.0
        %998 = vmatpush1.msra.mxu0 0.0
        %999 = vmatprep.subr.mxu0 0.0
        %1000 = vmatpush1.msra.mxu0 0.0
        %1001 = vmatprep.subr.mxu0 0.0
        %1002 = vmatpush1.msra.mxu0 0.0
        %1003 = vmatprep.subr.mxu0 0.0
        %1004 = vmatpush1.msra.mxu0 0.0
        %1005 = vmatprep.subr.mxu0 0.0
        %1006 = vmatpush1.msra.mxu0 0.0
        %1007 = vmatprep.subr.mxu0 0.0
        %1008 = vmatpush1.msra.mxu0 0.0
        %1009 = vmatprep.subr.mxu0 0.0
        %1010 = vmatpush1.msra.mxu0 0.0
        %1011 = vmatprep.subr.mxu0 0.0
        %1012 = vmatpush1.msra.mxu0 0.0
        %1013 = vmatprep.subr.mxu0 0.0
        %1014 = vmatpush1.msra.mxu0 0.0
        %1015 = vmatprep.mubr.f32.mxu0 0.0
        %1016 = vmatmul.mubr.f32.gmra.mrb[0].mxu0 %v949
        %v1017 = vpop.f32.mrb[0].mxu0
        %v1018 = vadd.f32 %v373, %v1017
        %v1019 = vpop.f32.mrb[0].mxu0
        %1020 = vdwg.mxu0
        %v1021 = vsel %vm411, %v1018, -inf
        %1022 = vmax.xlane.f32.xlu0 %v1021
        %v1023 = vpop.xlane.xlu0 %1022
        %v1024 = vsub.f32 %v1018, %v1023
        %v1025 = vmul.f32 %v1024, 1.442695
        %v1026 = vpow.pop %v1025
        %v1027 = vsel %vm411, %v1026, 0.0
        %1028 = vadd.xlane.f32.xlu0 %v1027
        %v1029 = vpop.xlane.xlu0 %1028
        %v1030 = vrcp.pop %v1029
        %v1031 = vmul.f32 %v1029, %v1030
        %v1032 = vsub.f32 2.0, %v1031
        %v1033 = vmul.f32 %v1030, %v1032
        %v1034 = vmul.f32 %v1026, %v1033
        %v1036 = vsel %vm411, %v1034, 0
        %v1039 = vsel %vm411, %v363, 0
        %1041 = vmatprep.subr.mxu0 0.0
        %1042 = vmatpush1.xpose.msra.mxu0 %v1039
        %1043 = vmatprep.subr.mxu0 0.0
        %1044 = vmatpush1.xpose.msra.mxu0 0.0
        %1045 = vmatprep.subr.mxu0 0.0
        %1046 = vmatpush1.xpose.msra.mxu0 0.0
        %1047 = vmatprep.subr.mxu0 0.0
        %1048 = vmatpush1.xpose.msra.mxu0 0.0
        %1049 = vmatprep.subr.mxu0 0.0
        %1050 = vmatpush1.xpose.msra.mxu0 0.0
        %1051 = vmatprep.subr.mxu0 0.0
        %1052 = vmatpush1.xpose.msra.mxu0 0.0
        %1053 = vmatprep.subr.mxu0 0.0
        %1054 = vmatpush1.xpose.msra.mxu0 0.0
        %1055 = vmatprep.subr.mxu0 0.0
        %1056 = vmatpush1.xpose.msra.mxu0 0.0
        %1057 = vmatprep.subr.mxu0 0.0
        %1058 = vmatpush1.xpose.msra.mxu0 0.0
        %1059 = vmatprep.subr.mxu0 0.0
        %1060 = vmatpush1.xpose.msra.mxu0 0.0
        %1061 = vmatprep.subr.mxu0 0.0
        %1062 = vmatpush1.xpose.msra.mxu0 0.0
        %1063 = vmatprep.subr.mxu0 0.0
        %1064 = vmatpush1.xpose.msra.mxu0 0.0
        %1065 = vmatprep.subr.mxu0 0.0
        %1066 = vmatpush1.xpose.msra.mxu0 0.0
        %1067 = vmatprep.subr.mxu0 0.0
        %1068 = vmatpush1.xpose.msra.mxu0 0.0
        %1069 = vmatprep.subr.mxu0 0.0
        %1070 = vmatpush1.xpose.msra.mxu0 0.0
        %1071 = vmatprep.subr.mxu0 0.0
        %1072 = vmatpush1.xpose.msra.mxu0 0.0
        %1073 = vmatprep.subr.mxu0 0.0
        %1074 = vmatpush1.xpose.msra.mxu0 0.0
        %1075 = vmatprep.subr.mxu0 0.0
        %1076 = vmatpush1.xpose.msra.mxu0 0.0
        %1077 = vmatprep.subr.mxu0 0.0
        %1078 = vmatpush1.xpose.msra.mxu0 0.0
        %1079 = vmatprep.subr.mxu0 0.0
        %1080 = vmatpush1.xpose.msra.mxu0 0.0
        %1081 = vmatprep.subr.mxu0 0.0
        %1082 = vmatpush1.xpose.msra.mxu0 0.0
        %1083 = vmatprep.subr.mxu0 0.0
        %1084 = vmatpush1.xpose.msra.mxu0 0.0
        %1085 = vmatprep.subr.mxu0 0.0
        %1086 = vmatpush1.xpose.msra.mxu0 0.0
        %1087 = vmatprep.subr.mxu0 0.0
        %1088 = vmatpush1.xpose.msra.mxu0 0.0
        %1089 = vmatprep.subr.mxu0 0.0
        %1090 = vmatpush1.xpose.msra.mxu0 0.0
        %1091 = vmatprep.subr.mxu0 0.0
        %1092 = vmatpush1.xpose.msra.mxu0 0.0
        %1093 = vmatprep.subr.mxu0 0.0
        %1094 = vmatpush1.xpose.msra.mxu0 0.0
        %1095 = vmatprep.subr.mxu0 0.0
        %1096 = vmatpush1.xpose.msra.mxu0 0.0
        %1097 = vmatprep.subr.mxu0 0.0
        %1098 = vmatpush1.xpose.msra.mxu0 0.0
        %1099 = vmatprep.subr.mxu0 0.0
        %1100 = vmatpush1.xpose.msra.mxu0 0.0
        %1101 = vmatprep.subr.mxu0 0.0
        %1102 = vmatpush1.xpose.msra.mxu0 0.0
        %1103 = vmatprep.subr.mxu0 0.0
        %1104 = vmatpush1.xpose.msra.mxu0 0.0
        %1105 = vmatprep.mubr.f32.mxu0 0.0
        %1106 = vmatmul.mubr.f32.gmra.mrb[0].mxu0 %v1036
        %v1107 = vpop.f32.mrb[0].mxu0
        %v1108 = vadd.f32 0.0, %v1107
        %v1109 = vpop.f32.mrb[0].mxu0
        %1110 = vdwg.mxu0
        %v1112 = vsel %vm411, %v1108, 0
        %1114 = vmatprep.subr.mxu0 0.0
        %1115 = vmatpush1.msra.mxu0 %v377
        %1116 = vmatprep.subr.mxu0 0.0
        %1117 = vmatpush1.msra.mxu0 0.0
        %1118 = vmatprep.subr.mxu0 0.0
        %1119 = vmatpush1.msra.mxu0 0.0
        %1120 = vmatprep.subr.mxu0 0.0
        %1121 = vmatpush1.msra.mxu0 0.0
        %1122 = vmatprep.subr.mxu0 0.0
        %1123 = vmatpush1.msra.mxu0 0.0
        %1124 = vmatprep.subr.mxu0 0.0
        %1125 = vmatpush1.msra.mxu0 0.0
        %1126 = vmatprep.subr.mxu0 0.0
        %1127 = vmatpush1.msra.mxu0 0.0
        %1128 = vmatprep.subr.mxu0 0.0
        %1129 = vmatpush1.msra.mxu0 0.0
        %1130 = vmatprep.subr.mxu0 0.0
        %1131 = vmatpush1.msra.mxu0 0.0
        %1132 = vmatprep.subr.mxu0 0.0
        %1133 = vmatpush1.msra.mxu0 0.0
        %1134 = vmatprep.subr.mxu0 0.0
        %1135 = vmatpush1.msra.mxu0 0.0
        %1136 = vmatprep.subr.mxu0 0.0
        %1137 = vmatpush1.msra.mxu0 0.0
        %1138 = vmatprep.subr.mxu0 0.0
        %1139 = vmatpush1.msra.mxu0 0.0
        %1140 = vmatprep.subr.mxu0 0.0
        %1141 = vmatpush1.msra.mxu0 0.0
        %1142 = vmatprep.subr.mxu0 0.0
        %1143 = vmatpush1.msra.mxu0 0.0
        %1144 = vmatprep.subr.mxu0 0.0
        %1145 = vmatpush1.msra.mxu0 0.0
        %1146 = vmatprep.subr.mxu0 0.0
        %1147 = vmatpush1.msra.mxu0 0.0
        %1148 = vmatprep.subr.mxu0 0.0
        %1149 = vmatpush1.msra.mxu0 0.0
        %1150 = vmatprep.subr.mxu0 0.0
        %1151 = vmatpush1.msra.mxu0 0.0
        %1152 = vmatprep.subr.mxu0 0.0
        %1153 = vmatpush1.msra.mxu0 0.0
        %1154 = vmatprep.subr.mxu0 0.0
        %1155 = vmatpush1.msra.mxu0 0.0
        %1156 = vmatprep.subr.mxu0 0.0
        %1157 = vmatpush1.msra.mxu0 0.0
        %1158 = vmatprep.subr.mxu0 0.0
        %1159 = vmatpush1.msra.mxu0 0.0
        %1160 = vmatprep.subr.mxu0 0.0
        %1161 = vmatpush1.msra.mxu0 0.0
        %1162 = vmatprep.subr.mxu0 0.0
        %1163 = vmatpush1.msra.mxu0 0.0
        %1164 = vmatprep.subr.mxu0 0.0
        %1165 = vmatpush1.msra.mxu0 0.0
        %1166 = vmatprep.subr.mxu0 0.0
        %1167 = vmatpush1.msra.mxu0 0.0
        %1168 = vmatprep.subr.mxu0 0.0
        %1169 = vmatpush1.msra.mxu0 0.0
        %1170 = vmatprep.subr.mxu0 0.0
        %1171 = vmatpush1.msra.mxu0 0.0
        %1172 = vmatprep.subr.mxu0 0.0
        %1173 = vmatpush1.msra.mxu0 0.0
        %1174 = vmatprep.subr.mxu0 0.0
        %1175 = vmatpush1.msra.mxu0 0.0
        %1176 = vmatprep.subr.mxu0 0.0
        %1177 = vmatpush1.msra.mxu0 0.0
        %1178 = vmatprep.mubr.f32.mxu0 0.0
        %1179 = vmatmul.mubr.f32.gmra.mrb[0].mxu0 %v1112
        %v1180 = vpop.f32.mrb[0].mxu0
        %v1181 = vadd.f32 0.0, %v1180
        %v1182 = vpop.f32.mrb[0].mxu0
        %1183 = vdwg.mxu0
        %v1184 = vadd.f32 %v913, %v1181
        %1185 = vxpose.xlu0.b32.start [1/16] %v328, 128
        %1186 = vxpose.xlu0.b32.cont [2/16] 0.0, 128
        %1187 = vxpose.xlu0.b32.cont [3/16] 0.0, 128
        %1188 = vxpose.xlu0.b32.cont [4/16] 0.0, 128
        %1189 = vxpose.xlu0.b32.cont [5/16] 0.0, 128
        %1190 = vxpose.xlu0.b32.cont [6/16] 0.0, 128
        %1191 = vxpose.xlu0.b32.cont [7/16] 0.0, 128
        %1192 = vxpose.xlu0.b32.cont [8/16] 0.0, 128
        %1193 = vxpose.xlu0.b32.cont [9/16] 0.0, 128
        %1194 = vxpose.xlu0.b32.cont [10/16] 0.0, 128
        %1195 = vxpose.xlu0.b32.cont [11/16] 0.0, 128
        %1196 = vxpose.xlu0.b32.cont [12/16] 0.0, 128
        %1197 = vxpose.xlu0.b32.cont [13/16] 0.0, 128
        %1198 = vxpose.xlu0.b32.cont [14/16] 0.0, 128
        %1199 = vxpose.xlu0.b32.cont [15/16] 0.0, 128
        %1200 = vxpose.xlu0.b32.end [16/16] 0.0, 128
        %v1201 = vpop.trf.xlu0
        %v1202 = vpop.trf.xlu0
        %v1203 = vpop.trf.xlu0
        %v1204 = vpop.trf.xlu0
        %v1205 = vpop.trf.xlu0
        %v1206 = vpop.trf.xlu0
        %v1207 = vpop.trf.xlu0
        %v1208 = vpop.trf.xlu0
        %v1209 = vpop.trf.xlu0
        %v1210 = vpop.trf.xlu0
        %v1211 = vpop.trf.xlu0
        %v1212 = vpop.trf.xlu0
        %v1213 = vpop.trf.xlu0
        %v1214 = vpop.trf.xlu0
        %v1215 = vpop.trf.xlu0
        %v1216 = vpop.trf.xlu0
        %v1218 = vsel %vm411, %v1201, 0
        %1220 = vmatprep.subr.mxu0 0.0
        %1221 = vmatpush1.msra.mxu0 %v348
        %1222 = vmatprep.subr.mxu0 0.0
        %1223 = vmatpush1.msra.mxu0 0.0
        %1224 = vmatprep.subr.mxu0 0.0
        %1225 = vmatpush1.msra.mxu0 0.0
        %1226 = vmatprep.subr.mxu0 0.0
        %1227 = vmatpush1.msra.mxu0 0.0
        %1228 = vmatprep.subr.mxu0 0.0
        %1229 = vmatpush1.msra.mxu0 0.0
        %1230 = vmatprep.subr.mxu0 0.0
        %1231 = vmatpush1.msra.mxu0 0.0
        %1232 = vmatprep.subr.mxu0 0.0
        %1233 = vmatpush1.msra.mxu0 0.0
        %1234 = vmatprep.subr.mxu0 0.0
        %1235 = vmatpush1.msra.mxu0 0.0
        %1236 = vmatprep.subr.mxu0 0.0
        %1237 = vmatpush1.msra.mxu0 0.0
        %1238 = vmatprep.subr.mxu0 0.0
        %1239 = vmatpush1.msra.mxu0 0.0
        %1240 = vmatprep.subr.mxu0 0.0
        %1241 = vmatpush1.msra.mxu0 0.0
        %1242 = vmatprep.subr.mxu0 0.0
        %1243 = vmatpush1.msra.mxu0 0.0
        %1244 = vmatprep.subr.mxu0 0.0
        %1245 = vmatpush1.msra.mxu0 0.0
        %1246 = vmatprep.subr.mxu0 0.0
        %1247 = vmatpush1.msra.mxu0 0.0
        %1248 = vmatprep.subr.mxu0 0.0
        %1249 = vmatpush1.msra.mxu0 0.0
        %1250 = vmatprep.subr.mxu0 0.0
        %1251 = vmatpush1.msra.mxu0 0.0
        %1252 = vmatprep.subr.mxu0 0.0
        %1253 = vmatpush1.msra.mxu0 0.0
        %1254 = vmatprep.subr.mxu0 0.0
        %1255 = vmatpush1.msra.mxu0 0.0
        %1256 = vmatprep.subr.mxu0 0.0
        %1257 = vmatpush1.msra.mxu0 0.0
        %1258 = vmatprep.subr.mxu0 0.0
        %1259 = vmatpush1.msra.mxu0 0.0
        %1260 = vmatprep.subr.mxu0 0.0
        %1261 = vmatpush1.msra.mxu0 0.0
        %1262 = vmatprep.subr.mxu0 0.0
        %1263 = vmatpush1.msra.mxu0 0.0
        %1264 = vmatprep.subr.mxu0 0.0
        %1265 = vmatpush1.msra.mxu0 0.0
        %1266 = vmatprep.subr.mxu0 0.0
        %1267 = vmatpush1.msra.mxu0 0.0
        %1268 = vmatprep.subr.mxu0 0.0
        %1269 = vmatpush1.msra.mxu0 0.0
        %1270 = vmatprep.subr.mxu0 0.0
        %1271 = vmatpush1.msra.mxu0 0.0
        %1272 = vmatprep.subr.mxu0 0.0
        %1273 = vmatpush1.msra.mxu0 0.0
        %1274 = vmatprep.subr.mxu0 0.0
        %1275 = vmatpush1.msra.mxu0 0.0
        %1276 = vmatprep.subr.mxu0 0.0
        %1277 = vmatpush1.msra.mxu0 0.0
        %1278 = vmatprep.subr.mxu0 0.0
        %1279 = vmatpush1.msra.mxu0 0.0
        %1280 = vmatprep.subr.mxu0 0.0
        %1281 = vmatpush1.msra.mxu0 0.0
        %1282 = vmatprep.subr.mxu0 0.0
        %1283 = vmatpush1.msra.mxu0 0.0
        %1284 = vmatprep.mubr.f32.mxu0 0.0
        %1285 = vmatmul.mubr.f32.gmra.mrb[0].mxu0 %v1218
        %v1286 = vpop.f32.mrb[0].mxu0
        %v1287 = vadd.f32 %v374, %v1286
        %v1288 = vpop.f32.mrb[0].mxu0
        %1289 = vdwg.mxu0
        %v1290 = vsel %vm411, %v1287, -inf
        %1291 = vmax.xlane.f32.xlu0 %v1290
        %v1292 = vpop.xlane.xlu0 %1291
        %v1293 = vsub.f32 %v1287, %v1292
        %v1294 = vmul.f32 %v1293, 1.442695
        %v1295 = vpow.pop %v1294
        %v1296 = vsel %vm411, %v1295, 0.0
        %1297 = vadd.xlane.f32.xlu0 %v1296
        %v1298 = vpop.xlane.xlu0 %1297
        %v1299 = vrcp.pop %v1298
        %v1300 = vmul.f32 %v1298, %v1299
        %v1301 = vsub.f32 2.0, %v1300
        %v1302 = vmul.f32 %v1299, %v1301
        %v1303 = vmul.f32 %v1295, %v1302
        %v1305 = vsel %vm411, %v1303, 0
        %v1308 = vsel %vm411, %v368, 0
        %1310 = vmatprep.subr.mxu0 0.0
        %1311 = vmatpush1.xpose.msra.mxu0 %v1308
        %1312 = vmatprep.subr.mxu0 0.0
        %1313 = vmatpush1.xpose.msra.mxu0 0.0
        %1314 = vmatprep.subr.mxu0 0.0
        %1315 = vmatpush1.xpose.msra.mxu0 0.0
        %1316 = vmatprep.subr.mxu0 0.0
        %1317 = vmatpush1.xpose.msra.mxu0 0.0
        %1318 = vmatprep.subr.mxu0 0.0
        %1319 = vmatpush1.xpose.msra.mxu0 0.0
        %1320 = vmatprep.subr.mxu0 0.0
        %1321 = vmatpush1.xpose.msra.mxu0 0.0
        %1322 = vmatprep.subr.mxu0 0.0
        %1323 = vmatpush1.xpose.msra.mxu0 0.0
        %1324 = vmatprep.subr.mxu0 0.0
        %1325 = vmatpush1.xpose.msra.mxu0 0.0
        %1326 = vmatprep.subr.mxu0 0.0
        %1327 = vmatpush1.xpose.msra.mxu0 0.0
        %1328 = vmatprep.subr.mxu0 0.0
        %1329 = vmatpush1.xpose.msra.mxu0 0.0
        %1330 = vmatprep.subr.mxu0 0.0
        %1331 = vmatpush1.xpose.msra.mxu0 0.0
        %1332 = vmatprep.subr.mxu0 0.0
        %1333 = vmatpush1.xpose.msra.mxu0 0.0
        %1334 = vmatprep.subr.mxu0 0.0
        %1335 = vmatpush1.xpose.msra.mxu0 0.0
        %1336 = vmatprep.subr.mxu0 0.0
        %1337 = vmatpush1.xpose.msra.mxu0 0.0
        %1338 = vmatprep.subr.mxu0 0.0
        %1339 = vmatpush1.xpose.msra.mxu0 0.0
        %1340 = vmatprep.subr.mxu0 0.0
        %1341 = vmatpush1.xpose.msra.mxu0 0.0
        %1342 = vmatprep.subr.mxu0 0.0
        %1343 = vmatpush1.xpose.msra.mxu0 0.0
        %1344 = vmatprep.subr.mxu0 0.0
        %1345 = vmatpush1.xpose.msra.mxu0 0.0
        %1346 = vmatprep.subr.mxu0 0.0
        %1347 = vmatpush1.xpose.msra.mxu0 0.0
        %1348 = vmatprep.subr.mxu0 0.0
        %1349 = vmatpush1.xpose.msra.mxu0 0.0
        %1350 = vmatprep.subr.mxu0 0.0
        %1351 = vmatpush1.xpose.msra.mxu0 0.0
        %1352 = vmatprep.subr.mxu0 0.0
        %1353 = vmatpush1.xpose.msra.mxu0 0.0
        %1354 = vmatprep.subr.mxu0 0.0
        %1355 = vmatpush1.xpose.msra.mxu0 0.0
        %1356 = vmatprep.subr.mxu0 0.0
        %1357 = vmatpush1.xpose.msra.mxu0 0.0
        %1358 = vmatprep.subr.mxu0 0.0
        %1359 = vmatpush1.xpose.msra.mxu0 0.0
        %1360 = vmatprep.subr.mxu0 0.0
        %1361 = vmatpush1.xpose.msra.mxu0 0.0
        %1362 = vmatprep.subr.mxu0 0.0
        %1363 = vmatpush1.xpose.msra.mxu0 0.0
        %1364 = vmatprep.subr.mxu0 0.0
        %1365 = vmatpush1.xpose.msra.mxu0 0.0
        %1366 = vmatprep.subr.mxu0 0.0
        %1367 = vmatpush1.xpose.msra.mxu0 0.0
        %1368 = vmatprep.subr.mxu0 0.0
        %1369 = vmatpush1.xpose.msra.mxu0 0.0
        %1370 = vmatprep.subr.mxu0 0.0
        %1371 = vmatpush1.xpose.msra.mxu0 0.0
        %1372 = vmatprep.subr.mxu0 0.0
        %1373 = vmatpush1.xpose.msra.mxu0 0.0
        %1374 = vmatprep.mubr.f32.mxu0 0.0
        %1375 = vmatmul.mubr.f32.gmra.mrb[0].mxu0 %v1305
        %v1376 = vpop.f32.mrb[0].mxu0
        %v1377 = vadd.f32 0.0, %v1376
        %v1378 = vpop.f32.mrb[0].mxu0
        %1379 = vdwg.mxu0
        %v1381 = vsel %vm411, %v1377, 0
        %1383 = vmatprep.subr.mxu0 0.0
        %1384 = vmatpush1.msra.mxu0 %v378
        %1385 = vmatprep.subr.mxu0 0.0
        %1386 = vmatpush1.msra.mxu0 0.0
        %1387 = vmatprep.subr.mxu0 0.0
        %1388 = vmatpush1.msra.mxu0 0.0
        %1389 = vmatprep.subr.mxu0 0.0
        %1390 = vmatpush1.msra.mxu0 0.0
        %1391 = vmatprep.subr.mxu0 0.0
        %1392 = vmatpush1.msra.mxu0 0.0
        %1393 = vmatprep.subr.mxu0 0.0
        %1394 = vmatpush1.msra.mxu0 0.0
        %1395 = vmatprep.subr.mxu0 0.0
        %1396 = vmatpush1.msra.mxu0 0.0
        %1397 = vmatprep.subr.mxu0 0.0
        %1398 = vmatpush1.msra.mxu0 0.0
        %1399 = vmatprep.subr.mxu0 0.0
        %1400 = vmatpush1.msra.mxu0 0.0
        %1401 = vmatprep.subr.mxu0 0.0
        %1402 = vmatpush1.msra.mxu0 0.0
        %1403 = vmatprep.subr.mxu0 0.0
        %1404 = vmatpush1.msra.mxu0 0.0
        %1405 = vmatprep.subr.mxu0 0.0
        %1406 = vmatpush1.msra.mxu0 0.0
        %1407 = vmatprep.subr.mxu0 0.0
        %1408 = vmatpush1.msra.mxu0 0.0
        %1409 = vmatprep.subr.mxu0 0.0
        %1410 = vmatpush1.msra.mxu0 0.0
        %1411 = vmatprep.subr.mxu0 0.0
        %1412 = vmatpush1.msra.mxu0 0.0
        %1413 = vmatprep.subr.mxu0 0.0
        %1414 = vmatpush1.msra.mxu0 0.0
        %1415 = vmatprep.subr.mxu0 0.0
        %1416 = vmatpush1.msra.mxu0 0.0
        %1417 = vmatprep.subr.mxu0 0.0
        %1418 = vmatpush1.msra.mxu0 0.0
        %1419 = vmatprep.subr.mxu0 0.0
        %1420 = vmatpush1.msra.mxu0 0.0
        %1421 = vmatprep.subr.mxu0 0.0
        %1422 = vmatpush1.msra.mxu0 0.0
        %1423 = vmatprep.subr.mxu0 0.0
        %1424 = vmatpush1.msra.mxu0 0.0
        %1425 = vmatprep.subr.mxu0 0.0
        %1426 = vmatpush1.msra.mxu0 0.0
        %1427 = vmatprep.subr.mxu0 0.0
        %1428 = vmatpush1.msra.mxu0 0.0
        %1429 = vmatprep.subr.mxu0 0.0
        %1430 = vmatpush1.msra.mxu0 0.0
        %1431 = vmatprep.subr.mxu0 0.0
        %1432 = vmatpush1.msra.mxu0 0.0
        %1433 = vmatprep.subr.mxu0 0.0
        %1434 = vmatpush1.msra.mxu0 0.0
        %1435 = vmatprep.subr.mxu0 0.0
        %1436 = vmatpush1.msra.mxu0 0.0
        %1437 = vmatprep.subr.mxu0 0.0
        %1438 = vmatpush1.msra.mxu0 0.0
        %1439 = vmatprep.subr.mxu0 0.0
        %1440 = vmatpush1.msra.mxu0 0.0
        %1441 = vmatprep.subr.mxu0 0.0
        %1442 = vmatpush1.msra.mxu0 0.0
        %1443 = vmatprep.subr.mxu0 0.0
        %1444 = vmatpush1.msra.mxu0 0.0
        %1445 = vmatprep.subr.mxu0 0.0
        %1446 = vmatpush1.msra.mxu0 0.0
        %1447 = vmatprep.mubr.f32.mxu0 0.0
        %1448 = vmatmul.mubr.f32.gmra.mrb[0].mxu0 %v1381
        %v1449 = vpop.f32.mrb[0].mxu0
        %v1450 = vadd.f32 0.0, %v1449
        %v1451 = vpop.f32.mrb[0].mxu0
        %1452 = vdwg.mxu0
        %v1453 = vadd.f32 %v1184, %v1450
        %1454 = vst.msk [vmem:[%s188] sm:$0xff] %vm206, %v1453
        %s1455 = sand.u32 %s115, 1
        %s1456 = scalar_lea.sflag [#allocation3], %s1455
        %s1457 = sand.u32 %s115, 1
        %s1458 = smul.addr %s1457, 8
        %s1459 = scalar_lea.vmem [#allocation2], %s1458
        // Predicated region
        $region37: #{tpu_custom_call.1} parent=35 // pred_check
          %p1460 = pneg %p125
        $region38: #{tpu_custom_call.1} parent=35 // pred_check_branch
          %1462 = sbr.rel (%p1460) target = $region40
        $region39: #{tpu_custom_call.1} parent=35 // pred_region
          %s1464 = ssub.s32 128, 128
          %1465 = vsyncadd %s1456, %s1464
          %s1466 = smul.addr %s18, 128
          %s1467 = scalar_lea.hbm %s4, %s1466
          %s1469 = sshll.u32 %s1459, 4
          %s1470 = int_to_ptr.vmem [resolvable:$true] %s1469
          %1472 = dma.vmem_to_hbm [thread:$0]  %s1470, 128, %s1467, %s1456
        $region40: #{tpu_custom_call.1} parent=35 // pred_fallthru
          _
      $region36: #{tpu_custom_call.1} parent=5 // pred_fallthru
        _
      %p1473 = scmp.le.s32.totalorder 2, %s13
      // Predicated region
      $region41: #{tpu_custom_call.1} parent=5 // pred_check
        %p1474 = pneg %p1473
      $region42: #{tpu_custom_call.1} parent=5 // pred_check_branch
        %1476 = sbr.rel (%p1474) target = $region44
      $region43: #{tpu_custom_call.1} parent=5 // pred_region
        %s1477 = ssub.s32 %s13, 2
        // Predicated region
        $region45: #{tpu_custom_call.1} parent=43 // pred_check
          %p1478 = pneg %p131
        $region46: #{tpu_custom_call.1} parent=43 // pred_check_branch
          %1480 = sbr.rel (%p1478) target = $region48
        $region47: #{tpu_custom_call.1} parent=43 // pred_region
          %s1481 = sand.u32 %s116, 1
          %s1482 = scalar_lea.sflag [#allocation3], %s1481
          %s1483 = sand.u32 %s116, 1
          %s1484 = smul.addr %s1483, 8
          %s1485 = scalar_lea.vmem [#allocation2], %s1484
          %1486 = dma.done %s1482, 128
        $region48: #{tpu_custom_call.1} parent=43 // pred_fallthru
          _
      $region44: #{tpu_custom_call.1} parent=5 // pred_fallthru
        _
    $region6: #{tpu_custom_call.1} parent=1 // loop_footer
      %s17 = sadd.s32 1, %s13
    $region7: #{tpu_custom_call.1} parent=1 // loop_footer_branch
      %12 = sbr.rel target = $region3
    $region8: #{tpu_custom_call.1} parent=1 // loop_exit
      _
    %1487 = vsyncpa [#allocation3], 1
    %s1488 = scalar_lea.sflag [#allocation3], 1
    %1489 = vsyncpa %s1488, 1

</llo_original>
